<compile_context>
chip_gen: v6e
topology: v6e:2x2x1
jax: 0.10.0
libtpu: 0.0.40
codegen_flags: <defaults>
</compile_context>

<pallas_src>
import functools

import numpy as np

import jax
import jax.numpy as jnp
from jax.experimental import pallas as pl
from jax.experimental.pallas import tpu as pltpu


def _round_up(x, m):
    return (x + m - 1) // m * m


def _shortcut_fused_kernel(*refs, layers, H, W):
    """Fused ShortcutConnection forward for ONE batch element.

    refs layout:
      refs[0]                 x_ref     (1, Cin0_p, HW)  input activation, (C, H*W)
      refs[1]                 mask_ref  (n_off, HW)      border masks, one {0,1} row
                                                         per unique tap offset
      refs[2+2i], refs[3+2i]  w_i, b_i  (Cout_p, K_i), (Cout_p, 1)
      refs[2+2L]              o_ref     (1, Cout, HW)
      refs[3+2L]              patch_ref (K_max, HW)      im2col scratch
      refs[4+2L]              dbl_ref   (C_max, 2*HW)    activation replicated twice
                                                         along the flat spatial axis so
                                                         any (dy, dx) shift is a static
                                                         lane-offset read
    layers: tuple of (k, cin_p, cout_p, relu, tap_mask_rows) static meta.
    """
    HW = H * W
    L = len(layers)
    x_ref, mask_ref = refs[0], refs[1]
    o_ref = refs[2 + 2 * L]
    patch_ref = refs[3 + 2 * L]
    dbl_ref = refs[4 + 2 * L]

    act = x_ref[0]                                        # (Cin0_p, HW)

    for i, (k, cin_p, cout_p, relu, tap_rows) in enumerate(layers):
        w_ref, b_ref = refs[2 + 2 * i], refs[3 + 2 * i]
        pad = (k - 1) // 2

        if k == 1:
            patches = act                                 # K = cin_p, no shifts needed
        else:
            # Stage the activation twice back-to-back so the tap shifted by
            # d = dy*W + dx is just the slice starting at lane offset d % HW.
            dbl_ref[0:cin_p, 0:HW] = act
            dbl_ref[0:cin_p, HW:2 * HW] = act
            for ky in range(k):
                for kx in range(k):
                    dy, dx = ky - pad, kx - pad
                    off = (dy * W + dx) % HW
                    tap = dbl_ref[0:cin_p, off:off + HW]  # shifted copy of act
                    if not (dy == 0 and dx == 0):
                        r = tap_rows[ky * k + kx]
                        tap = tap * mask_ref[r:r + 1, :]  # zero out-of-image pixels
                    t = ky * k + kx
                    patch_ref[t * cin_p:(t + 1) * cin_p, :] = tap
            patches = patch_ref[0:k * k * cin_p, :]

        # One lane-dense MXU contraction per layer: (Cout_p, K) x (K, HW).
        acc = jax.lax.dot_general(
            w_ref[...], patches,
            dimension_numbers=(((1,), (0,)), ((), ())),
            preferred_element_type=jnp.float32)
        acc = acc + b_ref[...]
        if relu:
            acc = jnp.maximum(acc, 0.0)
        act = acc.astype(act.dtype)

    o_ref[0] = act[0:o_ref.shape[1], :].astype(o_ref.dtype)


def shortcut_forward_pallas(x_nchw, mats, biases, layer_meta, out_channels):
    """x_nchw: (N, Cin, H, W).  mats[i]: (Cout_p, k*k*Cin_p).  biases[i]: (Cout_p, 1)."""
    N, C, H, W = x_nchw.shape
    HW = H * W
    dtype = x_nchw.dtype

    cin0_p = layer_meta[0][1]
    x_flat = x_nchw.reshape(N, C, HW)
    if cin0_p != C:
        # One-time tiny channel pad so every sublane store in the kernel is aligned.
        x_flat = jnp.pad(x_flat, ((0, 0), (0, cin0_p - C), (0, 0)))

    # Precompute {0,1} border masks (flat H*W layout), one row per unique (dy, dx).
    offsets = []
    for (k, _, _, _) in layer_meta:
        pad = (k - 1) // 2
        for ky in range(k):
            for kx in range(k):
                d = (ky - pad, kx - pad)
                if d not in offsets:
                    offsets.append(d)
    mask_np = np.zeros((len(offsets), H, W), np.float32)
    for r, (dy, dx) in enumerate(offsets):
        mask_np[r, max(0, -dy):min(H, H - dy), max(0, -dx):min(W, W - dx)] = 1.0
    masks = jnp.asarray(mask_np.reshape(len(offsets), HW), dtype=dtype)

    # Attach per-tap mask-row indices to the static layer meta.
    layers = []
    for (k, cin_p, cout_p, relu) in layer_meta:
        pad = (k - 1) // 2
        rows = tuple(offsets.index((ky - pad, kx - pad))
                     for ky in range(k) for kx in range(k))
        layers.append((k, cin_p, cout_p, relu, rows))
    layers = tuple(layers)

    k_patch = max(k * k * cin_p for (k, cin_p, _, _, _) in layers)
    c_max = max(cin_p for (_, cin_p, _, _, _) in layers)

    in_specs = [
        pl.BlockSpec((1, cin0_p, HW), lambda n: (n, 0, 0)),
        pl.BlockSpec(masks.shape, lambda n: (0, 0)),
    ]
    operands = [x_flat, masks]
    for wmat, bias in zip(mats, biases):
        in_specs.append(pl.BlockSpec(wmat.shape, lambda n: (0, 0)))
        in_specs.append(pl.BlockSpec(bias.shape, lambda n: (0, 0)))
        operands += [wmat, bias]

    kernel = functools.partial(_shortcut_fused_kernel, layers=layers, H=H, W=W)

    out = pl.pallas_call(
        kernel,
        out_shape=jax.ShapeDtypeStruct((N, out_channels, HW), dtype),
        grid=(N,),
        in_specs=in_specs,
        out_specs=pl.BlockSpec((1, out_channels, HW), lambda n: (n, 0, 0)),
        scratch_shapes=[
            pltpu.VMEM((k_patch, HW), dtype),     # im2col patch rows
            pltpu.VMEM((c_max, 2 * HW), dtype),   # doubled activation (shift source)
        ],
        compiler_params=pltpu.CompilerParams(
            dimension_semantics=("parallel",)),
    )(*operands)
    return out.reshape(N, out_channels, H, W)


class ShortcutConnectionPallas:
    """JAX/Pallas port of mmdet TTFHead ShortcutConnection (fused forward)."""

    def __init__(self, in_channels, out_channels, kernel_sizes, key):
        self.in_channels = in_channels
        self.out_channels = out_channels
        self.kernel_sizes = tuple(int(k) for k in kernel_sizes)
        for k in self.kernel_sizes:
            # padding=(k-1)//2 only preserves spatial size (PyTorch semantics) for odd k.
            assert k % 2 == 1, "ShortcutConnectionPallas supports odd kernel sizes only"

        self.params = []      # (w (KH,KW,Cin,Cout), b (Cout,))  -- used by the reference
        self.mats = []        # (Cout_p, k*k*Cin_p) im2col-packed weights for the kernel
        self.biases = []      # (Cout_p, 1) f32
        self.layer_meta = []  # (k, Cin_p, Cout_p, relu)

        cout_p = _round_up(out_channels, 8)
        for i, k in enumerate(self.kernel_sizes):
            inc = in_channels if i == 0 else out_channels
            cin_p = _round_up(inc, 8)
            key, kw, kb = jax.random.split(key, 3)
            fan_in = inc * k * k
            bound = 1.0 / float(np.sqrt(fan_in))
            w = jax.random.uniform(kw, (k, k, inc, out_channels),
                                   jnp.float32, -bound, bound)
            b = jax.random.uniform(kb, (out_channels,), jnp.float32, -bound, bound)
            self.params.append((w, b))

            # Pack weights for the kernel: column index = (ky*k + kx)*Cin_p + cin,
            # padded channels carry zeros (they contribute nothing).
            w_p = jnp.pad(w, ((0, 0), (0, 0),
                              (0, cin_p - inc), (0, cout_p - out_channels)))
            self.mats.append(
                jnp.transpose(w_p, (3, 0, 1, 2)).reshape(cout_p, k * k * cin_p))
            self.biases.append(
                jnp.pad(b, (0, cout_p - out_channels)).reshape(cout_p, 1)
                .astype(jnp.float32))
            relu = i < len(self.kernel_sizes) - 1
            self.layer_meta.append((k, cin_p, cout_p, relu))
        self.layer_meta = tuple(self.layer_meta)

    def __call__(self, x_nchw):
        return shortcut_forward_pallas(x_nchw, self.mats, self.biases,
                                       self.layer_meta, self.out_channels)


def _reference_forward(x_nchw, params):
    """Pure-JAX reference (lax conv) for the sanity check."""
    x = x_nchw
    n_layers = len(params)
    for i, (w, b) in enumerate(params):
        y = jax.lax.conv_general_dilated(
            x, w, window_strides=(1, 1), padding="SAME",
            dimension_numbers=("NCHW", "HWIO", "NCHW"))
        y = y + b.reshape(1, -1, 1, 1)
        if i < n_layers - 1:
            y = jnp.maximum(y, 0.0)
        x = y
    return x


if __name__ == "__main__":
    key = jax.random.PRNGKey(0)
    k_in, k_mod = jax.random.split(key)

    # small shapes consistent with the module: batch=2, Cin=4, H=W=16
    in_channels, out_channels = 4, 8
    kernel_sizes = [3, 3, 1]
    x = jax.random.normal(k_in, (2, in_channels, 16, 16), jnp.float32)

    module = ShortcutConnectionPallas(in_channels, out_channels,
                                      kernel_sizes, k_mod)

    out = jax.block_until_ready(module(x))

    ref = _reference_forward(x, module.params)
    assert out.shape == ref.shape == (2, out_channels, 16, 16)
    assert jnp.allclose(out, ref, atol=1e-3, rtol=1e-3), \
        float(jnp.max(jnp.abs(out - ref)))

    print("KERNEL_OK")
</pallas_src>

<mosaic_0001>
module attributes {stable_mosaic.version = 11 : i64} {
  func.func @_shortcut_fused_kernel(%arg0: i32, %arg1: memref<1x8x256xf32, #tpu.memory_space<vmem>>, %arg2: memref<9x256xf32, #tpu.memory_space<vmem>>, %arg3: memref<8x72xf32, #tpu.memory_space<vmem>>, %arg4: memref<8x1xf32, #tpu.memory_space<vmem>>, %arg5: memref<8x72xf32, #tpu.memory_space<vmem>>, %arg6: memref<8x1xf32, #tpu.memory_space<vmem>>, %arg7: memref<8x8xf32, #tpu.memory_space<vmem>>, %arg8: memref<8x1xf32, #tpu.memory_space<vmem>>, %arg9: memref<1x8x256xf32, #tpu.memory_space<vmem>>, %arg10: memref<72x256xf32, #tpu.memory_space<vmem>>, %arg11: memref<8x512xf32, #tpu.memory_space<vmem>>) attributes {dimension_semantics = [#tpu.dimension_semantics<parallel>], iteration_bounds = array<i64: 2>, scalar_prefetch = 0 : i64, scratch_operands = 2 : i64, tpu.core_type = #tpu.core_type<tc>, window_params = [{transform_indices = @transform_0, window_bounds = array<i64: 1, 8, 256>}, {pipeline_mode = #tpu.pipeline_mode<synchronous>, transform_indices = @transform_1, window_bounds = array<i64: 9, 256>}, {pipeline_mode = #tpu.pipeline_mode<synchronous>, transform_indices = @transform_2, window_bounds = array<i64: 8, 72>}, {pipeline_mode = #tpu.pipeline_mode<synchronous>, transform_indices = @transform_3, window_bounds = array<i64: 8, 1>}, {pipeline_mode = #tpu.pipeline_mode<synchronous>, transform_indices = @transform_4, window_bounds = array<i64: 8, 72>}, {pipeline_mode = #tpu.pipeline_mode<synchronous>, transform_indices = @transform_5, window_bounds = array<i64: 8, 1>}, {pipeline_mode = #tpu.pipeline_mode<synchronous>, transform_indices = @transform_6, window_bounds = array<i64: 8, 8>}, {pipeline_mode = #tpu.pipeline_mode<synchronous>, transform_indices = @transform_7, window_bounds = array<i64: 8, 1>}, {transform_indices = @transform_8, window_bounds = array<i64: 1, 8, 256>}]} {
    %c0 = arith.constant 0 : index
    %c0_0 = arith.constant 0 : index
    %c0_1 = arith.constant 0 : index
    %0 = vector.load %arg1[%c0, %c0_0, %c0_1] : memref<1x8x256xf32, #tpu.memory_space<vmem>>, vector<1x8x256xf32>
    %1 = vector.shape_cast %0 : vector<1x8x256xf32> to vector<8x256xf32>
    %c0_2 = arith.constant 0 : index
    %c0_3 = arith.constant 0 : index
    %2 = vector.load %arg11[%c0_2, %c0_3] : memref<8x512xf32, #tpu.memory_space<vmem>>, vector<8x256xf32>
    tpu.vector_store %arg11[%c0_2, %c0_3], %1 {strides = array<i32>} : memref<8x512xf32, #tpu.memory_space<vmem>>, vector<8x256xf32>,
    %c0_4 = arith.constant 0 : index
    %c256 = arith.constant 256 : index
    %3 = vector.load %arg11[%c0_4, %c256] : memref<8x512xf32, #tpu.memory_space<vmem>>, vector<8x256xf32>
    tpu.vector_store %arg11[%c0_4, %c256], %1 {strides = array<i32>} : memref<8x512xf32, #tpu.memory_space<vmem>>, vector<8x256xf32>,
    %c0_5 = arith.constant 0 : index
    %c239 = arith.constant 239 : index
    %4 = vector.load %arg11[%c0_5, %c239] : memref<8x512xf32, #tpu.memory_space<vmem>>, vector<8x256xf32>
    %c0_6 = arith.constant 0 : index
    %c0_7 = arith.constant 0 : index
    %5 = vector.load %arg2[%c0_6, %c0_7] : memref<9x256xf32, #tpu.memory_space<vmem>>, vector<1x256xf32>
    %6 = vector.broadcast %5 : vector<1x256xf32> to vector<8x256xf32>
    %7 = arith.mulf %4, %6 : vector<8x256xf32>
    %c0_8 = arith.constant 0 : index
    %c0_9 = arith.constant 0 : index
    %8 = vector.load %arg10[%c0_8, %c0_9] : memref<72x256xf32, #tpu.memory_space<vmem>>, vector<8x256xf32>
    tpu.vector_store %arg10[%c0_8, %c0_9], %7 {strides = array<i32>} : memref<72x256xf32, #tpu.memory_space<vmem>>, vector<8x256xf32>,
    %c0_10 = arith.constant 0 : index
    %c240 = arith.constant 240 : index
    %9 = vector.load %arg11[%c0_10, %c240] : memref<8x512xf32, #tpu.memory_space<vmem>>, vector<8x256xf32>
    %c1 = arith.constant 1 : index
    %c0_11 = arith.constant 0 : index
    %10 = vector.load %arg2[%c1, %c0_11] : memref<9x256xf32, #tpu.memory_space<vmem>>, vector<1x256xf32>
    %11 = vector.broadcast %10 : vector<1x256xf32> to vector<8x256xf32>
    %12 = arith.mulf %9, %11 : vector<8x256xf32>
    %c8 = arith.constant 8 : index
    %c0_12 = arith.constant 0 : index
    %13 = vector.load %arg10[%c8, %c0_12] : memref<72x256xf32, #tpu.memory_space<vmem>>, vector<8x256xf32>
    tpu.vector_store %arg10[%c8, %c0_12], %12 {strides = array<i32>} : memref<72x256xf32, #tpu.memory_space<vmem>>, vector<8x256xf32>,
    %c0_13 = arith.constant 0 : index
    %c241 = arith.constant 241 : index
    %14 = vector.load %arg11[%c0_13, %c241] : memref<8x512xf32, #tpu.memory_space<vmem>>, vector<8x256xf32>
    %c2 = arith.constant 2 : index
    %c0_14 = arith.constant 0 : index
    %15 = vector.load %arg2[%c2, %c0_14] : memref<9x256xf32, #tpu.memory_space<vmem>>, vector<1x256xf32>
    %16 = vector.broadcast %15 : vector<1x256xf32> to vector<8x256xf32>
    %17 = arith.mulf %14, %16 : vector<8x256xf32>
    %c16 = arith.constant 16 : index
    %c0_15 = arith.constant 0 : index
    %18 = vector.load %arg10[%c16, %c0_15] : memref<72x256xf32, #tpu.memory_space<vmem>>, vector<8x256xf32>
    tpu.vector_store %arg10[%c16, %c0_15], %17 {strides = array<i32>} : memref<72x256xf32, #tpu.memory_space<vmem>>, vector<8x256xf32>,
    %c0_16 = arith.constant 0 : index
    %c255 = arith.constant 255 : index
    %19 = vector.load %arg11[%c0_16, %c255] : memref<8x512xf32, #tpu.memory_space<vmem>>, vector<8x256xf32>
    %c3 = arith.constant 3 : index
    %c0_17 = arith.constant 0 : index
    %20 = vector.load %arg2[%c3, %c0_17] : memref<9x256xf32, #tpu.memory_space<vmem>>, vector<1x256xf32>
    %21 = vector.broadcast %20 : vector<1x256xf32> to vector<8x256xf32>
    %22 = arith.mulf %19, %21 : vector<8x256xf32>
    %c24 = arith.constant 24 : index
    %c0_18 = arith.constant 0 : index
    %23 = vector.load %arg10[%c24, %c0_18] : memref<72x256xf32, #tpu.memory_space<vmem>>, vector<8x256xf32>
    tpu.vector_store %arg10[%c24, %c0_18], %22 {strides = array<i32>} : memref<72x256xf32, #tpu.memory_space<vmem>>, vector<8x256xf32>,
    %c0_19 = arith.constant 0 : index
    %c0_20 = arith.constant 0 : index
    %24 = vector.load %arg11[%c0_19, %c0_20] : memref<8x512xf32, #tpu.memory_space<vmem>>, vector<8x256xf32>
    %c32 = arith.constant 32 : index
    %c0_21 = arith.constant 0 : index
    %25 = vector.load %arg10[%c32, %c0_21] : memref<72x256xf32, #tpu.memory_space<vmem>>, vector<8x256xf32>
    tpu.vector_store %arg10[%c32, %c0_21], %24 {strides = array<i32>} : memref<72x256xf32, #tpu.memory_space<vmem>>, vector<8x256xf32>,
    %c0_22 = arith.constant 0 : index
    %c1_23 = arith.constant 1 : index
    %26 = vector.load %arg11[%c0_22, %c1_23] : memref<8x512xf32, #tpu.memory_space<vmem>>, vector<8x256xf32>
    %c5 = arith.constant 5 : index
    %c0_24 = arith.constant 0 : index
    %27 = vector.load %arg2[%c5, %c0_24] : memref<9x256xf32, #tpu.memory_space<vmem>>, vector<1x256xf32>
    %28 = vector.broadcast %27 : vector<1x256xf32> to vector<8x256xf32>
    %29 = arith.mulf %26, %28 : vector<8x256xf32>
    %c40 = arith.constant 40 : index
    %c0_25 = arith.constant 0 : index
    %30 = vector.load %arg10[%c40, %c0_25] : memref<72x256xf32, #tpu.memory_space<vmem>>, vector<8x256xf32>
    tpu.vector_store %arg10[%c40, %c0_25], %29 {strides = array<i32>} : memref<72x256xf32, #tpu.memory_space<vmem>>, vector<8x256xf32>,
    %c0_26 = arith.constant 0 : index
    %c15 = arith.constant 15 : index
    %31 = vector.load %arg11[%c0_26, %c15] : memref<8x512xf32, #tpu.memory_space<vmem>>, vector<8x256xf32>
    %c6 = arith.constant 6 : index
    %c0_27 = arith.constant 0 : index
    %32 = vector.load %arg2[%c6, %c0_27] : memref<9x256xf32, #tpu.memory_space<vmem>>, vector<1x256xf32>
    %33 = vector.broadcast %32 : vector<1x256xf32> to vector<8x256xf32>
    %34 = arith.mulf %31, %33 : vector<8x256xf32>
    %c48 = arith.constant 48 : index
    %c0_28 = arith.constant 0 : index
    %35 = vector.load %arg10[%c48, %c0_28] : memref<72x256xf32, #tpu.memory_space<vmem>>, vector<8x256xf32>
    tpu.vector_store %arg10[%c48, %c0_28], %34 {strides = array<i32>} : memref<72x256xf32, #tpu.memory_space<vmem>>, vector<8x256xf32>,
    %c0_29 = arith.constant 0 : index
    %c16_30 = arith.constant 16 : index
    %36 = vector.load %arg11[%c0_29, %c16_30] : memref<8x512xf32, #tpu.memory_space<vmem>>, vector<8x256xf32>
    %c7 = arith.constant 7 : index
    %c0_31 = arith.constant 0 : index
    %37 = vector.load %arg2[%c7, %c0_31] : memref<9x256xf32, #tpu.memory_space<vmem>>, vector<1x256xf32>
    %38 = vector.broadcast %37 : vector<1x256xf32> to vector<8x256xf32>
    %39 = arith.mulf %36, %38 : vector<8x256xf32>
    %c56 = arith.constant 56 : index
    %c0_32 = arith.constant 0 : index
    %40 = vector.load %arg10[%c56, %c0_32] : memref<72x256xf32, #tpu.memory_space<vmem>>, vector<8x256xf32>
    tpu.vector_store %arg10[%c56, %c0_32], %39 {strides = array<i32>} : memref<72x256xf32, #tpu.memory_space<vmem>>, vector<8x256xf32>,
    %c0_33 = arith.constant 0 : index
    %c17 = arith.constant 17 : index
    %41 = vector.load %arg11[%c0_33, %c17] : memref<8x512xf32, #tpu.memory_space<vmem>>, vector<8x256xf32>
    %c8_34 = arith.constant 8 : index
    %c0_35 = arith.constant 0 : index
    %42 = vector.load %arg2[%c8_34, %c0_35] : memref<9x256xf32, #tpu.memory_space<vmem>>, vector<1x256xf32>
    %43 = vector.broadcast %42 : vector<1x256xf32> to vector<8x256xf32>
    %44 = arith.mulf %41, %43 : vector<8x256xf32>
    %c64 = arith.constant 64 : index
    %c0_36 = arith.constant 0 : index
    %45 = vector.load %arg10[%c64, %c0_36] : memref<72x256xf32, #tpu.memory_space<vmem>>, vector<8x256xf32>
    tpu.vector_store %arg10[%c64, %c0_36], %44 {strides = array<i32>} : memref<72x256xf32, #tpu.memory_space<vmem>>, vector<8x256xf32>,
    %c0_37 = arith.constant 0 : index
    %c0_38 = arith.constant 0 : index
    %46 = vector.load %arg10[%c0_37, %c0_38] : memref<72x256xf32, #tpu.memory_space<vmem>>, vector<72x256xf32>
    %c0_39 = arith.constant 0 : index
    %c0_40 = arith.constant 0 : index
    %47 = vector.load %arg3[%c0_39, %c0_40] : memref<8x72xf32, #tpu.memory_space<vmem>>, vector<8x72xf32>
    %cst = arith.constant dense<0.000000e+00> : vector<8x256xf32>
    %48 = tpu.matmul %47, %46, %cst {dimension_numbers = #tpu.dot_dimension_numbers<[1], [0], [0], [1], [0, 0, 1, 1], [], []>} : vector<8x72xf32>, vector<72x256xf32>, vector<8x256xf32> -> vector<8x256xf32>
    %c0_41 = arith.constant 0 : index
    %c0_42 = arith.constant 0 : index
    %49 = vector.load %arg4[%c0_41, %c0_42] : memref<8x1xf32, #tpu.memory_space<vmem>>, vector<8x1xf32>
    %50 = vector.broadcast %49 : vector<8x1xf32> to vector<8x256xf32>
    %51 = arith.addf %48, %50 : vector<8x256xf32>
    %cst_43 = arith.constant 0.000000e+00 : f32
    %52 = vector.broadcast %cst_43 : f32 to vector<8x256xf32>
    %53 = arith.maximumf %51, %52 : vector<8x256xf32>
    %c0_44 = arith.constant 0 : index
    %c0_45 = arith.constant 0 : index
    %54 = vector.load %arg11[%c0_44, %c0_45] : memref<8x512xf32, #tpu.memory_space<vmem>>, vector<8x256xf32>
    tpu.vector_store %arg11[%c0_44, %c0_45], %53 {strides = array<i32>} : memref<8x512xf32, #tpu.memory_space<vmem>>, vector<8x256xf32>,
    %c0_46 = arith.constant 0 : index
    %c256_47 = arith.constant 256 : index
    %55 = vector.load %arg11[%c0_46, %c256_47] : memref<8x512xf32, #tpu.memory_space<vmem>>, vector<8x256xf32>
    tpu.vector_store %arg11[%c0_46, %c256_47], %53 {strides = array<i32>} : memref<8x512xf32, #tpu.memory_space<vmem>>, vector<8x256xf32>,
    %c0_48 = arith.constant 0 : index
    %c239_49 = arith.constant 239 : index
    %56 = vector.load %arg11[%c0_48, %c239_49] : memref<8x512xf32, #tpu.memory_space<vmem>>, vector<8x256xf32>
    %c0_50 = arith.constant 0 : index
    %c0_51 = arith.constant 0 : index
    %57 = vector.load %arg2[%c0_50, %c0_51] : memref<9x256xf32, #tpu.memory_space<vmem>>, vector<1x256xf32>
    %58 = vector.broadcast %57 : vector<1x256xf32> to vector<8x256xf32>
    %59 = arith.mulf %56, %58 : vector<8x256xf32>
    %c0_52 = arith.constant 0 : index
    %c0_53 = arith.constant 0 : index
    %60 = vector.load %arg10[%c0_52, %c0_53] : memref<72x256xf32, #tpu.memory_space<vmem>>, vector<8x256xf32>
    tpu.vector_store %arg10[%c0_52, %c0_53], %59 {strides = array<i32>} : memref<72x256xf32, #tpu.memory_space<vmem>>, vector<8x256xf32>,
    %c0_54 = arith.constant 0 : index
    %c240_55 = arith.constant 240 : index
    %61 = vector.load %arg11[%c0_54, %c240_55] : memref<8x512xf32, #tpu.memory_space<vmem>>, vector<8x256xf32>
    %c1_56 = arith.constant 1 : index
    %c0_57 = arith.constant 0 : index
    %62 = vector.load %arg2[%c1_56, %c0_57] : memref<9x256xf32, #tpu.memory_space<vmem>>, vector<1x256xf32>
    %63 = vector.broadcast %62 : vector<1x256xf32> to vector<8x256xf32>
    %64 = arith.mulf %61, %63 : vector<8x256xf32>
    %c8_58 = arith.constant 8 : index
    %c0_59 = arith.constant 0 : index
    %65 = vector.load %arg10[%c8_58, %c0_59] : memref<72x256xf32, #tpu.memory_space<vmem>>, vector<8x256xf32>
    tpu.vector_store %arg10[%c8_58, %c0_59], %64 {strides = array<i32>} : memref<72x256xf32, #tpu.memory_space<vmem>>, vector<8x256xf32>,
    %c0_60 = arith.constant 0 : index
    %c241_61 = arith.constant 241 : index
    %66 = vector.load %arg11[%c0_60, %c241_61] : memref<8x512xf32, #tpu.memory_space<vmem>>, vector<8x256xf32>
    %c2_62 = arith.constant 2 : index
    %c0_63 = arith.constant 0 : index
    %67 = vector.load %arg2[%c2_62, %c0_63] : memref<9x256xf32, #tpu.memory_space<vmem>>, vector<1x256xf32>
    %68 = vector.broadcast %67 : vector<1x256xf32> to vector<8x256xf32>
    %69 = arith.mulf %66, %68 : vector<8x256xf32>
    %c16_64 = arith.constant 16 : index
    %c0_65 = arith.constant 0 : index
    %70 = vector.load %arg10[%c16_64, %c0_65] : memref<72x256xf32, #tpu.memory_space<vmem>>, vector<8x256xf32>
    tpu.vector_store %arg10[%c16_64, %c0_65], %69 {strides = array<i32>} : memref<72x256xf32, #tpu.memory_space<vmem>>, vector<8x256xf32>,
    %c0_66 = arith.constant 0 : index
    %c255_67 = arith.constant 255 : index
    %71 = vector.load %arg11[%c0_66, %c255_67] : memref<8x512xf32, #tpu.memory_space<vmem>>, vector<8x256xf32>
    %c3_68 = arith.constant 3 : index
    %c0_69 = arith.constant 0 : index
    %72 = vector.load %arg2[%c3_68, %c0_69] : memref<9x256xf32, #tpu.memory_space<vmem>>, vector<1x256xf32>
    %73 = vector.broadcast %72 : vector<1x256xf32> to vector<8x256xf32>
    %74 = arith.mulf %71, %73 : vector<8x256xf32>
    %c24_70 = arith.constant 24 : index
    %c0_71 = arith.constant 0 : index
    %75 = vector.load %arg10[%c24_70, %c0_71] : memref<72x256xf32, #tpu.memory_space<vmem>>, vector<8x256xf32>
    tpu.vector_store %arg10[%c24_70, %c0_71], %74 {strides = array<i32>} : memref<72x256xf32, #tpu.memory_space<vmem>>, vector<8x256xf32>,
    %c0_72 = arith.constant 0 : index
    %c0_73 = arith.constant 0 : index
    %76 = vector.load %arg11[%c0_72, %c0_73] : memref<8x512xf32, #tpu.memory_space<vmem>>, vector<8x256xf32>
    %c32_74 = arith.constant 32 : index
    %c0_75 = arith.constant 0 : index
    %77 = vector.load %arg10[%c32_74, %c0_75] : memref<72x256xf32, #tpu.memory_space<vmem>>, vector<8x256xf32>
    tpu.vector_store %arg10[%c32_74, %c0_75], %76 {strides = array<i32>} : memref<72x256xf32, #tpu.memory_space<vmem>>, vector<8x256xf32>,
    %c0_76 = arith.constant 0 : index
    %c1_77 = arith.constant 1 : index
    %78 = vector.load %arg11[%c0_76, %c1_77] : memref<8x512xf32, #tpu.memory_space<vmem>>, vector<8x256xf32>
    %c5_78 = arith.constant 5 : index
    %c0_79 = arith.constant 0 : index
    %79 = vector.load %arg2[%c5_78, %c0_79] : memref<9x256xf32, #tpu.memory_space<vmem>>, vector<1x256xf32>
    %80 = vector.broadcast %79 : vector<1x256xf32> to vector<8x256xf32>
    %81 = arith.mulf %78, %80 : vector<8x256xf32>
    %c40_80 = arith.constant 40 : index
    %c0_81 = arith.constant 0 : index
    %82 = vector.load %arg10[%c40_80, %c0_81] : memref<72x256xf32, #tpu.memory_space<vmem>>, vector<8x256xf32>
    tpu.vector_store %arg10[%c40_80, %c0_81], %81 {strides = array<i32>} : memref<72x256xf32, #tpu.memory_space<vmem>>, vector<8x256xf32>,
    %c0_82 = arith.constant 0 : index
    %c15_83 = arith.constant 15 : index
    %83 = vector.load %arg11[%c0_82, %c15_83] : memref<8x512xf32, #tpu.memory_space<vmem>>, vector<8x256xf32>
    %c6_84 = arith.constant 6 : index
    %c0_85 = arith.constant 0 : index
    %84 = vector.load %arg2[%c6_84, %c0_85] : memref<9x256xf32, #tpu.memory_space<vmem>>, vector<1x256xf32>
    %85 = vector.broadcast %84 : vector<1x256xf32> to vector<8x256xf32>
    %86 = arith.mulf %83, %85 : vector<8x256xf32>
    %c48_86 = arith.constant 48 : index
    %c0_87 = arith.constant 0 : index
    %87 = vector.load %arg10[%c48_86, %c0_87] : memref<72x256xf32, #tpu.memory_space<vmem>>, vector<8x256xf32>
    tpu.vector_store %arg10[%c48_86, %c0_87], %86 {strides = array<i32>} : memref<72x256xf32, #tpu.memory_space<vmem>>, vector<8x256xf32>,
    %c0_88 = arith.constant 0 : index
    %c16_89 = arith.constant 16 : index
    %88 = vector.load %arg11[%c0_88, %c16_89] : memref<8x512xf32, #tpu.memory_space<vmem>>, vector<8x256xf32>
    %c7_90 = arith.constant 7 : index
    %c0_91 = arith.constant 0 : index
    %89 = vector.load %arg2[%c7_90, %c0_91] : memref<9x256xf32, #tpu.memory_space<vmem>>, vector<1x256xf32>
    %90 = vector.broadcast %89 : vector<1x256xf32> to vector<8x256xf32>
    %91 = arith.mulf %88, %90 : vector<8x256xf32>
    %c56_92 = arith.constant 56 : index
    %c0_93 = arith.constant 0 : index
    %92 = vector.load %arg10[%c56_92, %c0_93] : memref<72x256xf32, #tpu.memory_space<vmem>>, vector<8x256xf32>
    tpu.vector_store %arg10[%c56_92, %c0_93], %91 {strides = array<i32>} : memref<72x256xf32, #tpu.memory_space<vmem>>, vector<8x256xf32>,
    %c0_94 = arith.constant 0 : index
    %c17_95 = arith.constant 17 : index
    %93 = vector.load %arg11[%c0_94, %c17_95] : memref<8x512xf32, #tpu.memory_space<vmem>>, vector<8x256xf32>
    %c8_96 = arith.constant 8 : index
    %c0_97 = arith.constant 0 : index
    %94 = vector.load %arg2[%c8_96, %c0_97] : memref<9x256xf32, #tpu.memory_space<vmem>>, vector<1x256xf32>
    %95 = vector.broadcast %94 : vector<1x256xf32> to vector<8x256xf32>
    %96 = arith.mulf %93, %95 : vector<8x256xf32>
    %c64_98 = arith.constant 64 : index
    %c0_99 = arith.constant 0 : index
    %97 = vector.load %arg10[%c64_98, %c0_99] : memref<72x256xf32, #tpu.memory_space<vmem>>, vector<8x256xf32>
    tpu.vector_store %arg10[%c64_98, %c0_99], %96 {strides = array<i32>} : memref<72x256xf32, #tpu.memory_space<vmem>>, vector<8x256xf32>,
    %c0_100 = arith.constant 0 : index
    %c0_101 = arith.constant 0 : index
    %98 = vector.load %arg10[%c0_100, %c0_101] : memref<72x256xf32, #tpu.memory_space<vmem>>, vector<72x256xf32>
    %c0_102 = arith.constant 0 : index
    %c0_103 = arith.constant 0 : index
    %99 = vector.load %arg5[%c0_102, %c0_103] : memref<8x72xf32, #tpu.memory_space<vmem>>, vector<8x72xf32>
    %cst_104 = arith.constant dense<0.000000e+00> : vector<8x256xf32>
    %100 = tpu.matmul %99, %98, %cst_104 {dimension_numbers = #tpu.dot_dimension_numbers<[1], [0], [0], [1], [0, 0, 1, 1], [], []>} : vector<8x72xf32>, vector<72x256xf32>, vector<8x256xf32> -> vector<8x256xf32>
    %c0_105 = arith.constant 0 : index
    %c0_106 = arith.constant 0 : index
    %101 = vector.load %arg6[%c0_105, %c0_106] : memref<8x1xf32, #tpu.memory_space<vmem>>, vector<8x1xf32>
    %102 = vector.broadcast %101 : vector<8x1xf32> to vector<8x256xf32>
    %103 = arith.addf %100, %102 : vector<8x256xf32>
    %cst_107 = arith.constant 0.000000e+00 : f32
    %104 = vector.broadcast %cst_107 : f32 to vector<8x256xf32>
    %105 = arith.maximumf %103, %104 : vector<8x256xf32>
    %c0_108 = arith.constant 0 : index
    %c0_109 = arith.constant 0 : index
    %106 = vector.load %arg7[%c0_108, %c0_109] : memref<8x8xf32, #tpu.memory_space<vmem>>, vector<8x8xf32>
    %cst_110 = arith.constant dense<0.000000e+00> : vector<8x256xf32>
    %107 = tpu.matmul %106, %105, %cst_110 {dimension_numbers = #tpu.dot_dimension_numbers<[1], [0], [0], [1], [0, 0, 1, 1], [], []>} : vector<8x8xf32>, vector<8x256xf32>, vector<8x256xf32> -> vector<8x256xf32>
    %c0_111 = arith.constant 0 : index
    %c0_112 = arith.constant 0 : index
    %108 = vector.load %arg8[%c0_111, %c0_112] : memref<8x1xf32, #tpu.memory_space<vmem>>, vector<8x1xf32>
    %109 = vector.broadcast %108 : vector<8x1xf32> to vector<8x256xf32>
    %110 = arith.addf %107, %109 : vector<8x256xf32>
    %c0_113 = arith.constant 0 : index
    %c0_114 = arith.constant 0 : index
    %c0_115 = arith.constant 0 : index
    %111 = vector.load %arg9[%c0_113, %c0_114, %c0_115] : memref<1x8x256xf32, #tpu.memory_space<vmem>>, vector<1x8x256xf32>
    %112 = vector.shape_cast %111 : vector<1x8x256xf32> to vector<8x256xf32>
    %113 = vector.shape_cast %110 : vector<8x256xf32> to vector<1x8x256xf32>
    tpu.vector_store %arg9[%c0_113, %c0_114, %c0_115], %113 {strides = array<i32>} : memref<1x8x256xf32, #tpu.memory_space<vmem>>, vector<1x8x256xf32>,
    return
  }
  func.func @transform_0(%arg0: i32) -> (i32, i32, i32) {
    %c0_i32 = arith.constant 0 : i32
    %c0_i32_0 = arith.constant 0 : i32
    %c0_i32_1 = arith.constant 0 : i32
    return %arg0, %c0_i32, %c0_i32_0 : i32, i32, i32
  }
  func.func @transform_1(%arg0: i32) -> (i32, i32) {
    %c0_i32 = arith.constant 0 : i32
    %c0_i32_0 = arith.constant 0 : i32
    %c0_i32_1 = arith.constant 0 : i32
    return %c0_i32, %c0_i32_0 : i32, i32
  }
  func.func @transform_2(%arg0: i32) -> (i32, i32) {
    %c0_i32 = arith.constant 0 : i32
    %c0_i32_0 = arith.constant 0 : i32
    %c0_i32_1 = arith.constant 0 : i32
    return %c0_i32, %c0_i32_0 : i32, i32
  }
  func.func @transform_3(%arg0: i32) -> (i32, i32) {
    %c0_i32 = arith.constant 0 : i32
    %c0_i32_0 = arith.constant 0 : i32
    %c0_i32_1 = arith.constant 0 : i32
    return %c0_i32, %c0_i32_0 : i32, i32
  }
  func.func @transform_4(%arg0: i32) -> (i32, i32) {
    %c0_i32 = arith.constant 0 : i32
    %c0_i32_0 = arith.constant 0 : i32
    %c0_i32_1 = arith.constant 0 : i32
    return %c0_i32, %c0_i32_0 : i32, i32
  }
  func.func @transform_5(%arg0: i32) -> (i32, i32) {
    %c0_i32 = arith.constant 0 : i32
    %c0_i32_0 = arith.constant 0 : i32
    %c0_i32_1 = arith.constant 0 : i32
    return %c0_i32, %c0_i32_0 : i32, i32
  }
  func.func @transform_6(%arg0: i32) -> (i32, i32) {
    %c0_i32 = arith.constant 0 : i32
    %c0_i32_0 = arith.constant 0 : i32
    %c0_i32_1 = arith.constant 0 : i32
    return %c0_i32, %c0_i32_0 : i32, i32
  }
  func.func @transform_7(%arg0: i32) -> (i32, i32) {
    %c0_i32 = arith.constant 0 : i32
    %c0_i32_0 = arith.constant 0 : i32
    %c0_i32_1 = arith.constant 0 : i32
    return %c0_i32, %c0_i32_0 : i32, i32
  }
  func.func @transform_8(%arg0: i32) -> (i32, i32, i32) {
    %c0_i32 = arith.constant 0 : i32
    %c0_i32_0 = arith.constant 0 : i32
    %c0_i32_1 = arith.constant 0 : i32
    return %arg0, %c0_i32, %c0_i32_0 : i32, i32, i32
  }
}

</mosaic_0001>

<llo_original>
// kernel: tpu_custom_call.1
$region0: #{tpu_custom_call.1}
  #allocation0 [shape = 'u32[]', space=smem, size = 0x4, offset = 0x4, fixed_abs, tag = 'smem constant byte address 0x4 - core index']
  #allocation1 [shape = 'u32[144,128]{1,0:T(1,128)}', space=vmem, size = 0x12000, scoped, tag = 'internal scratch']
  #allocation2 [shape = 'f32[72,256]{1,0:T(8,128)}', space=vmem, size = 0x12000, scoped, tag = 'scratch operand']
  #allocation3 [shape = 'f32[8,512]{1,0:T(8,128)}', space=vmem, size = 0x4000, scoped, tag = 'scratch operand']
  %s0 = inlined_call_operand.hbm [shape: f32[2,8,256], index: 0, kind: input, shape index: {}]
  %s1 = inlined_call_operand.hbm [shape: f32[9,256], index: 1, kind: input, shape index: {}]
  %s2 = inlined_call_operand.vmem [shape: f32[8,72], index: 2, kind: input, shape index: {}]
  %s3 = inlined_call_operand.vmem [shape: f32[8,1], index: 3, kind: input, shape index: {}]
  %s4 = inlined_call_operand.vmem [shape: f32[8,72], index: 4, kind: input, shape index: {}]
  %s5 = inlined_call_operand.vmem [shape: f32[8,1], index: 5, kind: input, shape index: {}]
  %s6 = inlined_call_operand.vmem [shape: f32[8,8], index: 6, kind: input, shape index: {}]
  %s7 = inlined_call_operand.vmem [shape: f32[8,1], index: 7, kind: input, shape index: {}]
  %s8 = inlined_call_operand.hbm [shape: f32[2,8,256], index: 8, kind: output, shape index: {}]
  %s9 = sld [smem:[#allocation0]]
  $region73: #{tpu_custom_call.1} parent=0
    _
  %s11 = ssub.s32 1, %s9
  %s12 = scalar_select 0, %s11, %s9
  $region1: #{tpu_custom_call.1} parent=0
    #allocation4 [shape = 'u8[16384]{0}', space=vmem, size = 0x4000, scoped, tag = 'input window, operand 0']
    #allocation5 [shape = 's32[2]{0}', space=sflag, size = 0x8, scoped, tag = 'scoped memory for tpu_custom_call.1']
    #allocation6 [shape = 's32[2]{0}', space=sflag, size = 0x8, scoped, tag = 'scoped memory for tpu_custom_call.1']
    #allocation7 [shape = 'u8[16384]{0}', space=vmem, size = 0x4000, scoped, tag = 'input window, operand 1, single buffered']
    #allocation8 [shape = 's32[1]{0}', space=sflag, size = 0x4, scoped, tag = 'scoped memory for tpu_custom_call.1']
    #allocation9 [shape = 'u8[16384]{0}', space=vmem, size = 0x4000, scoped, tag = 'output window, operand 0']
    %13 = vsyncpa [#allocation5], 0
    %s14 = scalar_lea.sflag [#allocation5], 1
    %15 = vsyncpa %s14, 0
    %16 = vsyncpa [#allocation8], 0
    %17 = vsyncpa [#allocation6], 0
    %s18 = scalar_lea.sflag [#allocation6], 1
    %19 = vsyncpa %s18, 0
    loop: start=0, step=1, limit=4
    $region2: #{tpu_custom_call.1} parent=1 // loop_pre_header
      _
    $region3: #{tpu_custom_call.1} parent=1 // loop_header
      %s21 = sphi 0, %s25
      %p22 = scmp.ge.s32.totalorder %s21, 4
      %s31 = sphi 0, %s33
      %s34 = sphi 0, %s31
      %s35 = sphi 0, %s34
      %s51 = sphi 0, %s35
      %s55 = sphi 0, %s55
      %s57 = sphi 0, %s55
      %s58 = sphi 0, %s57
      %s72 = sphi 0, %s58
      %s76 = sphi 0, %s76
      %s78 = sphi 0, %s76
      %s79 = sphi 0, %s78
      %s93 = sphi 0, %s79
      %s97 = sphi 0, %s97
      %s99 = sphi 0, %s97
      %s100 = sphi 0, %s99
      %s114 = sphi 0, %s100
      %s118 = sphi 0, %s118
      %s120 = sphi 0, %s118
      %s121 = sphi 0, %s120
      %s135 = sphi 0, %s121
      %s139 = sphi 0, %s139
      %s141 = sphi 0, %s139
      %s142 = sphi 0, %s141
      %s156 = sphi 0, %s142
      %s160 = sphi 0, %s160
      %s162 = sphi 0, %s160
      %s163 = sphi 0, %s162
      %s177 = sphi 0, %s163
      %s181 = sphi 0, %s181
      %s183 = sphi 0, %s181
      %s184 = sphi 0, %s183
      %s198 = sphi 0, %s184
      %s204 = sphi 0, %s206
      %s207 = sphi 0, %s204
      %s208 = sphi 0, %s207
      %s224 = sphi 0, %s208
    $region4: #{tpu_custom_call.1} parent=1 // loop_header_branch
      %24 = sbr.rel (%p22) target = $region8
    $region5: #{tpu_custom_call.1} parent=1 // loop_body
      %s26 = ssub.s32 %s21, 1
      %s27 = ssub.s32 %s21, 2
      %s28 = sadd.s32 %s21, 1
      %s29 = ssub.s32 %s21, %s28
      %p30 = scmp.eq.s32.totalorder %s29, 0
      %s32 = sadd.s32 %s31, 1
      %s33 = scalar_select %p30, %s31, %s32
      %p36 = pneg %p30
      %p37 = scmp.eq.s32.totalorder %s21, 1
      %p38 = por %p36, %p37
      %p39 = scmp.ne.s32.totalorder %s31, %s34
      %p40 = scmp.eq.s32.totalorder %s21, 0
      %p41 = por %p39, %p40
      %p42 = scmp.ne.s32.totalorder %s31, %s34
      %p43 = scmp.eq.s32.totalorder %s26, 1
      %p44 = por %p42, %p43
      %p45 = scmp.ne.s32.totalorder %s34, %s35
      %p46 = scmp.eq.s32.totalorder %s26, 0
      %p47 = por %p45, %p46
      %p48 = scmp.ne.s32.totalorder %s34, %s35
      %p49 = scmp.eq.s32.totalorder %s27, 1
      %p50 = por %p48, %p49
      %p52 = scmp.ne.s32.totalorder %s35, %s51
      %p53 = scmp.eq.s32.totalorder %s27, 0
      %p54 = por %p52, %p53
      %s56 = sadd.s32 %s55, 1
      %p59 = scmp.eq.s32.totalorder %s21, 1
      %p60 = scmp.ne.s32.totalorder %s55, %s57
      %p61 = scmp.eq.s32.totalorder %s21, 0
      %p62 = por %p60, %p61
      %p63 = scmp.ne.s32.totalorder %s55, %s57
      %p64 = scmp.eq.s32.totalorder %s26, 1
      %p65 = por %p63, %p64
      %p66 = scmp.ne.s32.totalorder %s57, %s58
      %p67 = scmp.eq.s32.totalorder %s26, 0
      %p68 = por %p66, %p67
      %p69 = scmp.ne.s32.totalorder %s57, %s58
      %p70 = scmp.eq.s32.totalorder %s27, 1
      %p71 = por %p69, %p70
      %p73 = scmp.ne.s32.totalorder %s58, %s72
      %p74 = scmp.eq.s32.totalorder %s27, 0
      %p75 = por %p73, %p74
      %s77 = sadd.s32 %s76, 1
      %p80 = scmp.eq.s32.totalorder %s21, 1
      %p81 = scmp.ne.s32.totalorder %s76, %s78
      %p82 = scmp.eq.s32.totalorder %s21, 0
      %p83 = por %p81, %p82
      %p84 = scmp.ne.s32.totalorder %s76, %s78
      %p85 = scmp.eq.s32.totalorder %s26, 1
      %p86 = por %p84, %p85
      %p87 = scmp.ne.s32.totalorder %s78, %s79
      %p88 = scmp.eq.s32.totalorder %s26, 0
      %p89 = por %p87, %p88
      %p90 = scmp.ne.s32.totalorder %s78, %s79
      %p91 = scmp.eq.s32.totalorder %s27, 1
      %p92 = por %p90, %p91
      %p94 = scmp.ne.s32.totalorder %s79, %s93
      %p95 = scmp.eq.s32.totalorder %s27, 0
      %p96 = por %p94, %p95
      %s98 = sadd.s32 %s97, 1
      %p101 = scmp.eq.s32.totalorder %s21, 1
      %p102 = scmp.ne.s32.totalorder %s97, %s99
      %p103 = scmp.eq.s32.totalorder %s21, 0
      %p104 = por %p102, %p103
      %p105 = scmp.ne.s32.totalorder %s97, %s99
      %p106 = scmp.eq.s32.totalorder %s26, 1
      %p107 = por %p105, %p106
      %p108 = scmp.ne.s32.totalorder %s99, %s100
      %p109 = scmp.eq.s32.totalorder %s26, 0
      %p110 = por %p108, %p109
      %p111 = scmp.ne.s32.totalorder %s99, %s100
      %p112 = scmp.eq.s32.totalorder %s27, 1
      %p113 = por %p111, %p112
      %p115 = scmp.ne.s32.totalorder %s100, %s114
      %p116 = scmp.eq.s32.totalorder %s27, 0
      %p117 = por %p115, %p116
      %s119 = sadd.s32 %s118, 1
      %p122 = scmp.eq.s32.totalorder %s21, 1
      %p123 = scmp.ne.s32.totalorder %s118, %s120
      %p124 = scmp.eq.s32.totalorder %s21, 0
      %p125 = por %p123, %p124
      %p126 = scmp.ne.s32.totalorder %s118, %s120
      %p127 = scmp.eq.s32.totalorder %s26, 1
      %p128 = por %p126, %p127
      %p129 = scmp.ne.s32.totalorder %s120, %s121
      %p130 = scmp.eq.s32.totalorder %s26, 0
      %p131 = por %p129, %p130
      %p132 = scmp.ne.s32.totalorder %s120, %s121
      %p133 = scmp.eq.s32.totalorder %s27, 1
      %p134 = por %p132, %p133
      %p136 = scmp.ne.s32.totalorder %s121, %s135
      %p137 = scmp.eq.s32.totalorder %s27, 0
      %p138 = por %p136, %p137
      %s140 = sadd.s32 %s139, 1
      %p143 = scmp.eq.s32.totalorder %s21, 1
      %p144 = scmp.ne.s32.totalorder %s139, %s141
      %p145 = scmp.eq.s32.totalorder %s21, 0
      %p146 = por %p144, %p145
      %p147 = scmp.ne.s32.totalorder %s139, %s141
      %p148 = scmp.eq.s32.totalorder %s26, 1
      %p149 = por %p147, %p148
      %p150 = scmp.ne.s32.totalorder %s141, %s142
      %p151 = scmp.eq.s32.totalorder %s26, 0
      %p152 = por %p150, %p151
      %p153 = scmp.ne.s32.totalorder %s141, %s142
      %p154 = scmp.eq.s32.totalorder %s27, 1
      %p155 = por %p153, %p154
      %p157 = scmp.ne.s32.totalorder %s142, %s156
      %p158 = scmp.eq.s32.totalorder %s27, 0
      %p159 = por %p157, %p158
      %s161 = sadd.s32 %s160, 1
      %p164 = scmp.eq.s32.totalorder %s21, 1
      %p165 = scmp.ne.s32.totalorder %s160, %s162
      %p166 = scmp.eq.s32.totalorder %s21, 0
      %p167 = por %p165, %p166
      %p168 = scmp.ne.s32.totalorder %s160, %s162
      %p169 = scmp.eq.s32.totalorder %s26, 1
      %p170 = por %p168, %p169
      %p171 = scmp.ne.s32.totalorder %s162, %s163
      %p172 = scmp.eq.s32.totalorder %s26, 0
      %p173 = por %p171, %p172
      %p174 = scmp.ne.s32.totalorder %s162, %s163
      %p175 = scmp.eq.s32.totalorder %s27, 1
      %p176 = por %p174, %p175
      %p178 = scmp.ne.s32.totalorder %s163, %s177
      %p179 = scmp.eq.s32.totalorder %s27, 0
      %p180 = por %p178, %p179
      %s182 = sadd.s32 %s181, 1
      %p185 = scmp.eq.s32.totalorder %s21, 1
      %p186 = scmp.ne.s32.totalorder %s181, %s183
      %p187 = scmp.eq.s32.totalorder %s21, 0
      %p188 = por %p186, %p187
      %p189 = scmp.ne.s32.totalorder %s181, %s183
      %p190 = scmp.eq.s32.totalorder %s26, 1
      %p191 = por %p189, %p190
      %p192 = scmp.ne.s32.totalorder %s183, %s184
      %p193 = scmp.eq.s32.totalorder %s26, 0
      %p194 = por %p192, %p193
      %p195 = scmp.ne.s32.totalorder %s183, %s184
      %p196 = scmp.eq.s32.totalorder %s27, 1
      %p197 = por %p195, %p196
      %p199 = scmp.ne.s32.totalorder %s184, %s198
      %p200 = scmp.eq.s32.totalorder %s27, 0
      %p201 = por %p199, %p200
      %s202 = ssub.s32 %s21, %s28
      %p203 = scmp.eq.s32.totalorder %s202, 0
      %s205 = sadd.s32 %s204, 1
      %s206 = scalar_select %p203, %s204, %s205
      %p209 = pneg %p203
      %p210 = scmp.eq.s32.totalorder %s21, 1
      %p211 = por %p209, %p210
      %p212 = scmp.ne.s32.totalorder %s204, %s207
      %p213 = scmp.eq.s32.totalorder %s21, 0
      %p214 = por %p212, %p213
      %p215 = scmp.ne.s32.totalorder %s204, %s207
      %p216 = scmp.eq.s32.totalorder %s26, 1
      %p217 = por %p215, %p216
      %p218 = scmp.ne.s32.totalorder %s207, %s208
      %p219 = scmp.eq.s32.totalorder %s26, 0
      %p220 = por %p218, %p219
      %p221 = scmp.ne.s32.totalorder %s207, %s208
      %p222 = scmp.eq.s32.totalorder %s27, 1
      %p223 = por %p221, %p222
      %p225 = scmp.ne.s32.totalorder %s208, %s224
      %p226 = scmp.eq.s32.totalorder %s27, 0
      %p227 = por %p225, %p226
      %p228 = scmp.le.s32.totalorder 1, %s21
      %p229 = scmp.lt.s32.totalorder %s21, 3
      %p230 = pnand %p228, %p229
      %p231 = pneg %p230
      // Predicated region
      $region9: #{tpu_custom_call.1} parent=5 // pred_check
        _
      $region10: #{tpu_custom_call.1} parent=5 // pred_check_branch
        %233 = sbr.rel (%p230) target = $region12
      $region11: #{tpu_custom_call.1} parent=5 // pred_region
        %s234 = ssub.s32 %s21, 1
        // Predicated region
        $region13: #{tpu_custom_call.1} parent=11 // pred_check
          %p235 = pneg %p68
        $region14: #{tpu_custom_call.1} parent=11 // pred_check_branch
          %237 = sbr.rel (%p235) target = $region16
        $region15: #{tpu_custom_call.1} parent=11 // pred_region
          %s239 = ssub.s32 512, 512
          %240 = vsyncadd [#allocation8], %s239
          %s241 = sshll.u32 [#allocation7], 4
          %s242 = int_to_ptr.vmem [resolvable:$true] %s241
          %247 = dma.hbm_to_vmem [thread:$0]  %s1, 512, %s242, [#allocation8], 256, 256, 16
        $region16: #{tpu_custom_call.1} parent=11 // pred_fallthru
          _
        // Predicated region
        $region17: #{tpu_custom_call.1} parent=11 // pred_check
          %p248 = pneg %p89
        $region18: #{tpu_custom_call.1} parent=11 // pred_check_branch
          %250 = sbr.rel (%p248) target = $region20
        $region19: #{tpu_custom_call.1} parent=11 // pred_region
          _
        $region20: #{tpu_custom_call.1} parent=11 // pred_fallthru
          _
        // Predicated region
        $region21: #{tpu_custom_call.1} parent=11 // pred_check
          %p251 = pneg %p110
        $region22: #{tpu_custom_call.1} parent=11 // pred_check_branch
          %253 = sbr.rel (%p251) target = $region24
        $region23: #{tpu_custom_call.1} parent=11 // pred_region
          _
        $region24: #{tpu_custom_call.1} parent=11 // pred_fallthru
          _
        // Predicated region
        $region25: #{tpu_custom_call.1} parent=11 // pred_check
          %p254 = pneg %p131
        $region26: #{tpu_custom_call.1} parent=11 // pred_check_branch
          %256 = sbr.rel (%p254) target = $region28
        $region27: #{tpu_custom_call.1} parent=11 // pred_region
          _
        $region28: #{tpu_custom_call.1} parent=11 // pred_fallthru
          _
        // Predicated region
        $region29: #{tpu_custom_call.1} parent=11 // pred_check
          %p257 = pneg %p152
        $region30: #{tpu_custom_call.1} parent=11 // pred_check_branch
          %259 = sbr.rel (%p257) target = $region32
        $region31: #{tpu_custom_call.1} parent=11 // pred_region
          _
        $region32: #{tpu_custom_call.1} parent=11 // pred_fallthru
          _
        // Predicated region
        $region33: #{tpu_custom_call.1} parent=11 // pred_check
          %p260 = pneg %p173
        $region34: #{tpu_custom_call.1} parent=11 // pred_check_branch
          %262 = sbr.rel (%p260) target = $region36
        $region35: #{tpu_custom_call.1} parent=11 // pred_region
          _
        $region36: #{tpu_custom_call.1} parent=11 // pred_fallthru
          _
        // Predicated region
        $region37: #{tpu_custom_call.1} parent=11 // pred_check
          %p263 = pneg %p194
        $region38: #{tpu_custom_call.1} parent=11 // pred_check_branch
          %265 = sbr.rel (%p263) target = $region40
        $region39: #{tpu_custom_call.1} parent=11 // pred_region
          _
        $region40: #{tpu_custom_call.1} parent=11 // pred_fallthru
          _
      $region12: #{tpu_custom_call.1} parent=5 // pred_fallthru
        _
      %p266 = scmp.lt.s32.totalorder %s21, 2
      // Predicated region
      $region41: #{tpu_custom_call.1} parent=5 // pred_check
        %p267 = pneg %p266
      $region42: #{tpu_custom_call.1} parent=5 // pred_check_branch
        %269 = sbr.rel (%p267) target = $region44
      $region43: #{tpu_custom_call.1} parent=5 // pred_region
        // Predicated region
        $region45: #{tpu_custom_call.1} parent=43 // pred_check
          %p270 = pneg %p41
        $region46: #{tpu_custom_call.1} parent=43 // pred_check_branch
          %272 = sbr.rel (%p270) target = $region48
        $region47: #{tpu_custom_call.1} parent=43 // pred_region
          %s273 = sand.u32 %s31, 1
          %s274 = scalar_lea.sflag [#allocation5], %s273
          %s275 = sand.u32 %s31, 1
          %s276 = smul.addr %s275, 16
          %s277 = scalar_lea.vmem [#allocation4], %s276
          %s279 = ssub.s32 256, 256
          %280 = vsyncadd %s274, %s279
          %s281 = smul.addr %s21, 2
          %s282 = smul.addr %s281, 128
          %s283 = scalar_lea.hbm %s0, %s282
          %s285 = sshll.u32 %s277, 4
          %s286 = int_to_ptr.vmem [resolvable:$true] %s285
          %288 = dma.hbm_to_vmem [thread:$0]  %s283, 256, %s286, %s274
        $region48: #{tpu_custom_call.1} parent=43 // pred_fallthru
          _
      $region44: #{tpu_custom_call.1} parent=5 // pred_fallthru
        _
      %p289 = scmp.le.s32.totalorder 1, %s21
      %p290 = scmp.lt.s32.totalorder %s21, 3
      %p291 = pnand %p289, %p290
      %p292 = pneg %p291
      // Predicated region
      $region49: #{tpu_custom_call.1} parent=5 // pred_check
        _
      $region50: #{tpu_custom_call.1} parent=5 // pred_check_branch
        %294 = sbr.rel (%p291) target = $region52
      $region51: #{tpu_custom_call.1} parent=5 // pred_region
        %s295 = ssub.s32 %s21, 1
        %s296 = sand.u32 %s34, 1
        %s297 = scalar_lea.sflag [#allocation5], %s296
        %s298 = sand.u32 %s34, 1
        %s299 = smul.addr %s298, 16
        %s300 = scalar_lea.vmem [#allocation4], %s299
        // Predicated region
        $region53: #{tpu_custom_call.1} parent=51 // pred_check
          %p301 = pneg %p47
        $region54: #{tpu_custom_call.1} parent=51 // pred_check_branch
          %303 = sbr.rel (%p301) target = $region56
        $region55: #{tpu_custom_call.1} parent=51 // pred_region
          %304 = dma.done %s297, 256
        $region56: #{tpu_custom_call.1} parent=51 // pred_fallthru
          _
        // Predicated region
        $region57: #{tpu_custom_call.1} parent=51 // pred_check
          %p305 = pneg %p68
        $region58: #{tpu_custom_call.1} parent=51 // pred_check_branch
          %307 = sbr.rel (%p305) target = $region60
        $region59: #{tpu_custom_call.1} parent=51 // pred_region
          %308 = dma.done [#allocation8], 512
        $region60: #{tpu_custom_call.1} parent=51 // pred_fallthru
          _
        %s309 = sand.u32 %s34, 1
        %s310 = scalar_lea.sflag [#allocation5], %s309
        %s311 = sand.u32 %s34, 1
        %s312 = smul.addr %s311, 16
        %s313 = scalar_lea.vmem [#allocation4], %s312
        %p314 = pneg %p47
        %p315 = pneg %p44
        %p316 = pneg %p68
        %p317 = pneg %p65
        %p318 = pneg %p89
        %p319 = pneg %p86
        %p320 = pneg %p110
        %p321 = pneg %p107
        %p322 = pneg %p131
        %p323 = pneg %p128
        %p324 = pneg %p152
        %p325 = pneg %p149
        %p326 = pneg %p173
        %p327 = pneg %p170
        %p328 = pneg %p194
        %p329 = pneg %p191
        %p330 = pneg %p220
        %p331 = pneg %p217
        %s332 = sand.u32 %s207, 1
        %s333 = scalar_lea.sflag [#allocation6], %s332
        %s334 = sand.u32 %s207, 1
        %s335 = smul.addr %s334, 16
        %s336 = scalar_lea.vmem [#allocation9], %s335
        %v337 = vld [vmem:[%s300] sm:$0xff]
        %v338 = vld [vmem:[%s300 + $0x8] sm:$0xff]
        %339 = vst [vmem:[#allocation3] sm:$0xff] %v337
        %340 = vst [vmem:[#allocation3 + $0x8] sm:$0xff] %v338
        %341 = vst [vmem:[#allocation3 + $0x10] sm:$0xff] %v337
        %342 = vst [vmem:[#allocation3 + $0x18] sm:$0xff] %v338
        %v343 = vld [vmem:[#allocation3 + $0x8] sm:$0xff]
        %v344 = vld [vmem:[#allocation3 + $0x10] sm:$0xff]
        %v345 = vld [vmem:[#allocation3 + $0x18] sm:$0xff]
        %v346 = vld [vmem:[#allocation7] ss:$8 sm:$0x3]
        %v348 = vlaneseq
        %v349 = vshrl.u32 %v348, 7
        %v350 = vsub.s32 0, %v349
        %v351 = vrot.slane %v346, %v350
        %v352 = vlaneseq
        %v353 = vshrl.u32 %v352, 7
        %v354 = vsub.s32 1, %v353
        %v355 = vrot.slane %v346, %v354
        %356 = vrot.lane.b32.xlu0 %v351, 111
        %v357 = vpop.permute.xlu0 %356
        %358 = vrot.lane.b32.xlu0 %v355, 111
        %v359 = vpop.permute.xlu0 %358
        %vm360 = vcmask 908288
        %v361 = vsel %vm360, %v357, %v359
        %v365 = vmul.f32 %v343, %v357
        %v366 = vmul.f32 %v344, %v361
        %v367 = vmul.f32 %v345, %v359
        %371 = vrot.lane.b32.xlu0 %v365, 17
        %v372 = vpop.permute.xlu0 %371
        %373 = vrot.lane.b32.xlu0 %v366, 17
        %v374 = vpop.permute.xlu0 %373
        %375 = vrot.lane.b32.xlu0 %v367, 17
        %v376 = vpop.permute.xlu0 %375
        %vm377 = vcmask 138240
        %v378 = vsel %vm377, %v372, %v374
        %v379 = vsel %vm377, %v374, %v376
        %382 = vst [vmem:[#allocation2] sm:$0xff] %v378
        %383 = vst [vmem:[#allocation2 + $0x8] sm:$0xff] %v379
        %v384 = vld [vmem:[#allocation3 + $0x8] sm:$0xff]
        %v385 = vld [vmem:[#allocation3 + $0x10] sm:$0xff]
        %v386 = vld [vmem:[#allocation3 + $0x18] sm:$0xff]
        %s387 = scalar_lea.vmem [#allocation7], 1
        %v388 = vld [vmem:[%s387] ss:$8 sm:$0x3]
        %v390 = vlaneseq
        %v391 = vshrl.u32 %v390, 7
        %v392 = vsub.s32 0, %v391
        %v393 = vrot.slane %v388, %v392
        %v394 = vlaneseq
        %v395 = vshrl.u32 %v394, 7
        %v396 = vsub.s32 1, %v395
        %v397 = vrot.slane %v388, %v396
        %398 = vrot.lane.b32.xlu0 %v393, 112
        %v399 = vpop.permute.xlu0 %398
        %400 = vrot.lane.b32.xlu0 %v397, 112
        %v401 = vpop.permute.xlu0 %400
        %vm402 = vcmask 916480
        %v403 = vsel %vm402, %v399, %v401
        %v407 = vmul.f32 %v384, %v399
        %v408 = vmul.f32 %v385, %v403
        %v409 = vmul.f32 %v386, %v401
        %413 = vrot.lane.b32.xlu0 %v407, 16
        %v414 = vpop.permute.xlu0 %413
        %415 = vrot.lane.b32.xlu0 %v408, 16
        %v416 = vpop.permute.xlu0 %415
        %417 = vrot.lane.b32.xlu0 %v409, 16
        %v418 = vpop.permute.xlu0 %417
        %vm419 = vcmask 130048
        %v420 = vsel %vm419, %v414, %v416
        %v421 = vsel %vm419, %v416, %v418
        %424 = vst [vmem:[#allocation2 + $0x10] sm:$0xff] %v420
        %425 = vst [vmem:[#allocation2 + $0x18] sm:$0xff] %v421
        %v426 = vld [vmem:[#allocation3 + $0x8] sm:$0xff]
        %v427 = vld [vmem:[#allocation3 + $0x10] sm:$0xff]
        %v428 = vld [vmem:[#allocation3 + $0x18] sm:$0xff]
        %s429 = scalar_lea.vmem [#allocation7], 2
        %v430 = vld [vmem:[%s429] ss:$8 sm:$0x3]
        %v432 = vlaneseq
        %v433 = vshrl.u32 %v432, 7
        %v434 = vsub.s32 0, %v433
        %v435 = vrot.slane %v430, %v434
        %v436 = vlaneseq
        %v437 = vshrl.u32 %v436, 7
        %v438 = vsub.s32 1, %v437
        %v439 = vrot.slane %v430, %v438
        %440 = vrot.lane.b32.xlu0 %v435, 113
        %v441 = vpop.permute.xlu0 %440
        %442 = vrot.lane.b32.xlu0 %v439, 113
        %v443 = vpop.permute.xlu0 %442
        %vm444 = vcmask 924672
        %v445 = vsel %vm444, %v441, %v443
        %v449 = vmul.f32 %v426, %v441
        %v450 = vmul.f32 %v427, %v445
        %v451 = vmul.f32 %v428, %v443
        %455 = vrot.lane.b32.xlu0 %v449, 15
        %v456 = vpop.permute.xlu0 %455
        %457 = vrot.lane.b32.xlu0 %v450, 15
        %v458 = vpop.permute.xlu0 %457
        %459 = vrot.lane.b32.xlu0 %v451, 15
        %v460 = vpop.permute.xlu0 %459
        %vm461 = vcmask 121856
        %v462 = vsel %vm461, %v456, %v458
        %v463 = vsel %vm461, %v458, %v460
        %466 = vst [vmem:[#allocation2 + $0x20] sm:$0xff] %v462
        %467 = vst [vmem:[#allocation2 + $0x28] sm:$0xff] %v463
        %v468 = vld [vmem:[#allocation3 + $0x8] sm:$0xff]
        %v469 = vld [vmem:[#allocation3 + $0x10] sm:$0xff]
        %v470 = vld [vmem:[#allocation3 + $0x18] sm:$0xff]
        %s471 = scalar_lea.vmem [#allocation7], 3
        %v472 = vld [vmem:[%s471] ss:$8 sm:$0x3]
        %v474 = vlaneseq
        %v475 = vshrl.u32 %v474, 7
        %v476 = vsub.s32 0, %v475
        %v477 = vrot.slane %v472, %v476
        %v478 = vlaneseq
        %v479 = vshrl.u32 %v478, 7
        %v480 = vsub.s32 1, %v479
        %v481 = vrot.slane %v472, %v480
        %482 = vrot.lane.b32.xlu0 %v477, 127
        %v483 = vpop.permute.xlu0 %482
        %484 = vrot.lane.b32.xlu0 %v481, 127
        %v485 = vpop.permute.xlu0 %484
        %vm486 = vcmask 1039360
        %v487 = vsel %vm486, %v483, %v485
        %v491 = vmul.f32 %v468, %v483
        %v492 = vmul.f32 %v469, %v487
        %v493 = vmul.f32 %v470, %v485
        %497 = vrot.lane.b32.xlu0 %v491, 1
        %v498 = vpop.permute.xlu0 %497
        %499 = vrot.lane.b32.xlu0 %v492, 1
        %v500 = vpop.permute.xlu0 %499
        %501 = vrot.lane.b32.xlu0 %v493, 1
        %v502 = vpop.permute.xlu0 %501
        %vm503 = vcmask 7168
        %v504 = vsel %vm503, %v498, %v500
        %v505 = vsel %vm503, %v500, %v502
        %508 = vst [vmem:[#allocation2 + $0x30] sm:$0xff] %v504
        %509 = vst [vmem:[#allocation2 + $0x38] sm:$0xff] %v505
        %v510 = vld [vmem:[#allocation3] sm:$0xff]
        %v511 = vld [vmem:[#allocation3 + $0x8] sm:$0xff]
        %512 = vst [vmem:[#allocation2 + $0x40] sm:$0xff] %v510
        %513 = vst [vmem:[#allocation2 + $0x48] sm:$0xff] %v511
        %v514 = vld [vmem:[#allocation3] sm:$0xff]
        %v515 = vld [vmem:[#allocation3 + $0x8] sm:$0xff]
        %v516 = vld [vmem:[#allocation3 + $0x10] sm:$0xff]
        %s517 = scalar_lea.vmem [#allocation7], 5
        %v518 = vld [vmem:[%s517] ss:$8 sm:$0x3]
        %v520 = vlaneseq
        %v521 = vshrl.u32 %v520, 7
        %v522 = vsub.s32 0, %v521
        %v523 = vrot.slane %v518, %v522
        %v524 = vlaneseq
        %v525 = vshrl.u32 %v524, 7
        %v526 = vsub.s32 1, %v525
        %v527 = vrot.slane %v518, %v526
        %528 = vrot.lane.b32.xlu0 %v523, 1
        %v529 = vpop.permute.xlu0 %528
        %530 = vrot.lane.b32.xlu0 %v527, 1
        %v531 = vpop.permute.xlu0 %530
        %v532 = vsel %vm503, %v529, %v531
        %v536 = vmul.f32 %v514, %v529
        %v537 = vmul.f32 %v515, %v532
        %v538 = vmul.f32 %v516, %v531
        %542 = vrot.lane.b32.xlu0 %v536, 127
        %v543 = vpop.permute.xlu0 %542
        %544 = vrot.lane.b32.xlu0 %v537, 127
        %v545 = vpop.permute.xlu0 %544
        %546 = vrot.lane.b32.xlu0 %v538, 127
        %v547 = vpop.permute.xlu0 %546
        %v548 = vsel %vm486, %v543, %v545
        %v549 = vsel %vm486, %v545, %v547
        %552 = vst [vmem:[#allocation2 + $0x50] sm:$0xff] %v548
        %553 = vst [vmem:[#allocation2 + $0x58] sm:$0xff] %v549
        %v554 = vld [vmem:[#allocation3] sm:$0xff]
        %v555 = vld [vmem:[#allocation3 + $0x8] sm:$0xff]
        %v556 = vld [vmem:[#allocation3 + $0x10] sm:$0xff]
        %s557 = scalar_lea.vmem [#allocation7], 6
        %v558 = vld [vmem:[%s557] ss:$8 sm:$0x3]
        %v560 = vlaneseq
        %v561 = vshrl.u32 %v560, 7
        %v562 = vsub.s32 0, %v561
        %v563 = vrot.slane %v558, %v562
        %v564 = vlaneseq
        %v565 = vshrl.u32 %v564, 7
        %v566 = vsub.s32 1, %v565
        %v567 = vrot.slane %v558, %v566
        %568 = vrot.lane.b32.xlu0 %v563, 15
        %v569 = vpop.permute.xlu0 %568
        %570 = vrot.lane.b32.xlu0 %v567, 15
        %v571 = vpop.permute.xlu0 %570
        %v572 = vsel %vm461, %v569, %v571
        %v576 = vmul.f32 %v554, %v569
        %v577 = vmul.f32 %v555, %v572
        %v578 = vmul.f32 %v556, %v571
        %582 = vrot.lane.b32.xlu0 %v576, 113
        %v583 = vpop.permute.xlu0 %582
        %584 = vrot.lane.b32.xlu0 %v577, 113
        %v585 = vpop.permute.xlu0 %584
        %586 = vrot.lane.b32.xlu0 %v578, 113
        %v587 = vpop.permute.xlu0 %586
        %v588 = vsel %vm444, %v583, %v585
        %v589 = vsel %vm444, %v585, %v587
        %592 = vst [vmem:[#allocation2 + $0x60] sm:$0xff] %v588
        %593 = vst [vmem:[#allocation2 + $0x68] sm:$0xff] %v589
        %v594 = vld [vmem:[#allocation3] sm:$0xff]
        %v595 = vld [vmem:[#allocation3 + $0x8] sm:$0xff]
        %v596 = vld [vmem:[#allocation3 + $0x10] sm:$0xff]
        %s597 = scalar_lea.vmem [#allocation7], 7
        %v598 = vld [vmem:[%s597] ss:$8 sm:$0x3]
        %v600 = vlaneseq
        %v601 = vshrl.u32 %v600, 7
        %v602 = vsub.s32 0, %v601
        %v603 = vrot.slane %v598, %v602
        %v604 = vlaneseq
        %v605 = vshrl.u32 %v604, 7
        %v606 = vsub.s32 1, %v605
        %v607 = vrot.slane %v598, %v606
        %608 = vrot.lane.b32.xlu0 %v603, 16
        %v609 = vpop.permute.xlu0 %608
        %610 = vrot.lane.b32.xlu0 %v607, 16
        %v611 = vpop.permute.xlu0 %610
        %v612 = vsel %vm419, %v609, %v611
        %v616 = vmul.f32 %v594, %v609
        %v617 = vmul.f32 %v595, %v612
        %v618 = vmul.f32 %v596, %v611
        %622 = vrot.lane.b32.xlu0 %v616, 112
        %v623 = vpop.permute.xlu0 %622
        %624 = vrot.lane.b32.xlu0 %v617, 112
        %v625 = vpop.permute.xlu0 %624
        %626 = vrot.lane.b32.xlu0 %v618, 112
        %v627 = vpop.permute.xlu0 %626
        %v628 = vsel %vm402, %v623, %v625
        %v629 = vsel %vm402, %v625, %v627
        %632 = vst [vmem:[#allocation2 + $0x70] sm:$0xff] %v628
        %633 = vst [vmem:[#allocation2 + $0x78] sm:$0xff] %v629
        %v634 = vld [vmem:[#allocation3] sm:$0xff]
        %v635 = vld [vmem:[#allocation3 + $0x8] sm:$0xff]
        %v636 = vld [vmem:[#allocation3 + $0x10] sm:$0xff]
        %s637 = scalar_lea.vmem [#allocation7], 16
        %v638 = vld [vmem:[%s637] ss:$8 sm:$0x3]
        %v640 = vlaneseq
        %v641 = vshrl.u32 %v640, 7
        %v642 = vsub.s32 0, %v641
        %v643 = vrot.slane %v638, %v642
        %v644 = vlaneseq
        %v645 = vshrl.u32 %v644, 7
        %v646 = vsub.s32 1, %v645
        %v647 = vrot.slane %v638, %v646
        %648 = vrot.lane.b32.xlu0 %v643, 17
        %v649 = vpop.permute.xlu0 %648
        %650 = vrot.lane.b32.xlu0 %v647, 17
        %v651 = vpop.permute.xlu0 %650
        %v652 = vsel %vm377, %v649, %v651
        %v656 = vmul.f32 %v634, %v649
        %v657 = vmul.f32 %v635, %v652
        %v658 = vmul.f32 %v636, %v651
        %662 = vrot.lane.b32.xlu0 %v656, 111
        %v663 = vpop.permute.xlu0 %662
        %664 = vrot.lane.b32.xlu0 %v657, 111
        %v665 = vpop.permute.xlu0 %664
        %666 = vrot.lane.b32.xlu0 %v658, 111
        %v667 = vpop.permute.xlu0 %666
        %v668 = vsel %vm360, %v663, %v665
        %v669 = vsel %vm360, %v665, %v667
        %672 = vst [vmem:[#allocation2 + $0x80] sm:$0xff] %v668
        %673 = vst [vmem:[#allocation2 + $0x88] sm:$0xff] %v669
        %v674 = vld [vmem:[#allocation2] sm:$0xff]
        %v675 = vld [vmem:[#allocation2 + $0x8] sm:$0xff]
        %v676 = vld [vmem:[#allocation2 + $0x10] sm:$0xff]
        %v677 = vld [vmem:[#allocation2 + $0x18] sm:$0xff]
        %v678 = vld [vmem:[#allocation2 + $0x20] sm:$0xff]
        %v679 = vld [vmem:[#allocation2 + $0x28] sm:$0xff]
        %v680 = vld [vmem:[#allocation2 + $0x30] sm:$0xff]
        %v681 = vld [vmem:[#allocation2 + $0x38] sm:$0xff]
        %v682 = vld [vmem:[#allocation2 + $0x40] sm:$0xff]
        %v683 = vld [vmem:[#allocation2 + $0x48] sm:$0xff]
        %v684 = vld [vmem:[#allocation2 + $0x50] sm:$0xff]
        %v685 = vld [vmem:[#allocation2 + $0x58] sm:$0xff]
        %v686 = vld [vmem:[#allocation2 + $0x60] sm:$0xff]
        %v687 = vld [vmem:[#allocation2 + $0x68] sm:$0xff]
        %v688 = vld [vmem:[#allocation2 + $0x70] sm:$0xff]
        %v689 = vld [vmem:[#allocation2 + $0x78] sm:$0xff]
        %v690 = vld [vmem:[#allocation2 + $0x80] sm:$0xff]
        %v691 = vld [vmem:[#allocation2 + $0x88] sm:$0xff]
        %v692 = vld [vmem:[%s2] sm:$0xff]
        %v693 = vld [vmem:[%s3] sm:$0xff]
        %695 = vset.pattern.permute.xlu0 0
        %696 = vperm.xlu0 %695, %v693
        %v697 = vpop.permute.xlu0 %696
        %vm699 = vcmask 588800
        %v701 = vsel %vm699, %v692, 0
        %703 = vmatprep.subr.mxu0 0.0
        %704 = vmatpush1.msra.mxu0 0.0
        %705 = vmatprep.subr.mxu0 0.0
        %706 = vmatpush1.msra.mxu0 0.0
        %707 = vmatprep.subr.mxu0 0.0
        %708 = vmatpush1.msra.mxu0 0.0
        %709 = vmatprep.subr.mxu0 0.0
        %710 = vmatpush1.msra.mxu0 0.0
        %711 = vmatprep.subr.mxu0 0.0
        %712 = vmatpush1.msra.mxu0 0.0
        %713 = vmatprep.subr.mxu0 0.0
        %714 = vmatpush1.msra.mxu0 0.0
        %715 = vmatprep.subr.mxu0 0.0
        %716 = vmatpush1.msra.mxu0 0.0
        %717 = vmatprep.subr.mxu0 %v691
        %718 = vmatpush1.msra.mxu0 %v690
        %719 = vmatprep.subr.mxu0 %v689
        %720 = vmatpush1.msra.mxu0 %v688
        %721 = vmatprep.subr.mxu0 %v687
        %722 = vmatpush1.msra.mxu0 %v686
        %723 = vmatprep.subr.mxu0 %v685
        %724 = vmatpush1.msra.mxu0 %v684
        %725 = vmatprep.subr.mxu0 %v683
        %726 = vmatpush1.msra.mxu0 %v682
        %727 = vmatprep.subr.mxu0 %v681
        %728 = vmatpush1.msra.mxu0 %v680
        %729 = vmatprep.subr.mxu0 %v679
        %730 = vmatpush1.msra.mxu0 %v678
        %731 = vmatprep.subr.mxu0 %v677
        %732 = vmatpush1.msra.mxu0 %v676
        %733 = vmatprep.subr.mxu0 %v675
        %734 = vmatpush1.msra.mxu0 %v674
        %735 = vmatprep.subr.mxu0 0.0
        %736 = vmatpush2.msra.mxu0 0.0
        %737 = vmatprep.subr.mxu0 0.0
        %738 = vmatpush2.msra.mxu0 0.0
        %739 = vmatprep.subr.mxu0 0.0
        %740 = vmatpush2.msra.mxu0 0.0
        %741 = vmatprep.subr.mxu0 0.0
        %742 = vmatpush2.msra.mxu0 0.0
        %743 = vmatprep.subr.mxu0 0.0
        %744 = vmatpush2.msra.mxu0 0.0
        %745 = vmatprep.subr.mxu0 0.0
        %746 = vmatpush2.msra.mxu0 0.0
        %747 = vmatprep.subr.mxu0 0.0
        %748 = vmatpush2.msra.mxu0 0.0
        %749 = vmatprep.subr.mxu0 0.0
        %750 = vmatpush2.msra.mxu0 0.0
        %751 = vmatprep.subr.mxu0 0.0
        %752 = vmatpush2.msra.mxu0 0.0
        %753 = vmatprep.subr.mxu0 0.0
        %754 = vmatpush2.msra.mxu0 0.0
        %755 = vmatprep.subr.mxu0 0.0
        %756 = vmatpush2.msra.mxu0 0.0
        %757 = vmatprep.subr.mxu0 0.0
        %758 = vmatpush2.msra.mxu0 0.0
        %759 = vmatprep.subr.mxu0 0.0
        %760 = vmatpush2.msra.mxu0 0.0
        %761 = vmatprep.subr.mxu0 0.0
        %762 = vmatpush2.msra.mxu0 0.0
        %763 = vmatprep.subr.mxu0 0.0
        %764 = vmatpush2.msra.mxu0 0.0
        %765 = vmatprep.subr.mxu0 0.0
        %766 = vmatpush2.msra.mxu0 0.0
        %767 = vmatprep.mubr.f32.mxu0 0.0
        %768 = vmatmul.mubr.f32.gmra.mxu0 %v701
        %v769 = vpop.f32.mrf.mxu0
        %v770 = vadd.f32 %v697, %v769
        %v771 = vpop.f32.mrf.mxu0
        %v772 = vadd.f32 %v697, %v771
        %773 = vdwg.mxu0
        %v774 = vmax.f32 %v770, 0.0
        %v775 = vmax.f32 %v772, 0.0
        %776 = vst [vmem:[#allocation3] sm:$0xff] %v774
        %777 = vst [vmem:[#allocation3 + $0x8] sm:$0xff] %v775
        %778 = vst [vmem:[#allocation3 + $0x10] sm:$0xff] %v774
        %779 = vst [vmem:[#allocation3 + $0x18] sm:$0xff] %v775
        %v780 = vld [vmem:[#allocation3 + $0x8] sm:$0xff]
        %v781 = vld [vmem:[#allocation3 + $0x10] sm:$0xff]
        %v782 = vld [vmem:[#allocation3 + $0x18] sm:$0xff]
        %v783 = vld [vmem:[#allocation7] ss:$8 sm:$0x3]
        %v785 = vlaneseq
        %v786 = vshrl.u32 %v785, 7
        %v787 = vsub.s32 0, %v786
        %v788 = vrot.slane %v783, %v787
        %v789 = vlaneseq
        %v790 = vshrl.u32 %v789, 7
        %v791 = vsub.s32 1, %v790
        %v792 = vrot.slane %v783, %v791
        %793 = vrot.lane.b32.xlu0 %v788, 111
        %v794 = vpop.permute.xlu0 %793
        %795 = vrot.lane.b32.xlu0 %v792, 111
        %v796 = vpop.permute.xlu0 %795
        %v797 = vsel %vm360, %v794, %v796
        %v801 = vmul.f32 %v780, %v794
        %v802 = vmul.f32 %v781, %v797
        %v803 = vmul.f32 %v782, %v796
        %807 = vrot.lane.b32.xlu0 %v801, 17
        %v808 = vpop.permute.xlu0 %807
        %809 = vrot.lane.b32.xlu0 %v802, 17
        %v810 = vpop.permute.xlu0 %809
        %811 = vrot.lane.b32.xlu0 %v803, 17
        %v812 = vpop.permute.xlu0 %811
        %v813 = vsel %vm377, %v808, %v810
        %v814 = vsel %vm377, %v810, %v812
        %817 = vst [vmem:[#allocation2] sm:$0xff] %v813
        %818 = vst [vmem:[#allocation2 + $0x8] sm:$0xff] %v814
        %v819 = vld [vmem:[#allocation3 + $0x8] sm:$0xff]
        %v820 = vld [vmem:[#allocation3 + $0x10] sm:$0xff]
        %v821 = vld [vmem:[#allocation3 + $0x18] sm:$0xff]
        %v822 = vld [vmem:[%s387] ss:$8 sm:$0x3]
        %v824 = vlaneseq
        %v825 = vshrl.u32 %v824, 7
        %v826 = vsub.s32 0, %v825
        %v827 = vrot.slane %v822, %v826
        %v828 = vlaneseq
        %v829 = vshrl.u32 %v828, 7
        %v830 = vsub.s32 1, %v829
        %v831 = vrot.slane %v822, %v830
        %832 = vrot.lane.b32.xlu0 %v827, 112
        %v833 = vpop.permute.xlu0 %832
        %834 = vrot.lane.b32.xlu0 %v831, 112
        %v835 = vpop.permute.xlu0 %834
        %v836 = vsel %vm402, %v833, %v835
        %v840 = vmul.f32 %v819, %v833
        %v841 = vmul.f32 %v820, %v836
        %v842 = vmul.f32 %v821, %v835
        %846 = vrot.lane.b32.xlu0 %v840, 16
        %v847 = vpop.permute.xlu0 %846
        %848 = vrot.lane.b32.xlu0 %v841, 16
        %v849 = vpop.permute.xlu0 %848
        %850 = vrot.lane.b32.xlu0 %v842, 16
        %v851 = vpop.permute.xlu0 %850
        %v852 = vsel %vm419, %v847, %v849
        %v853 = vsel %vm419, %v849, %v851
        %856 = vst [vmem:[#allocation2 + $0x10] sm:$0xff] %v852
        %857 = vst [vmem:[#allocation2 + $0x18] sm:$0xff] %v853
        %v858 = vld [vmem:[#allocation3 + $0x8] sm:$0xff]
        %v859 = vld [vmem:[#allocation3 + $0x10] sm:$0xff]
        %v860 = vld [vmem:[#allocation3 + $0x18] sm:$0xff]
        %v861 = vld [vmem:[%s429] ss:$8 sm:$0x3]
        %v863 = vlaneseq
        %v864 = vshrl.u32 %v863, 7
        %v865 = vsub.s32 0, %v864
        %v866 = vrot.slane %v861, %v865
        %v867 = vlaneseq
        %v868 = vshrl.u32 %v867, 7
        %v869 = vsub.s32 1, %v868
        %v870 = vrot.slane %v861, %v869
        %871 = vrot.lane.b32.xlu0 %v866, 113
        %v872 = vpop.permute.xlu0 %871
        %873 = vrot.lane.b32.xlu0 %v870, 113
        %v874 = vpop.permute.xlu0 %873
        %v875 = vsel %vm444, %v872, %v874
        %v879 = vmul.f32 %v858, %v872
        %v880 = vmul.f32 %v859, %v875
        %v881 = vmul.f32 %v860, %v874
        %885 = vrot.lane.b32.xlu0 %v879, 15
        %v886 = vpop.permute.xlu0 %885
        %887 = vrot.lane.b32.xlu0 %v880, 15
        %v888 = vpop.permute.xlu0 %887
        %889 = vrot.lane.b32.xlu0 %v881, 15
        %v890 = vpop.permute.xlu0 %889
        %v891 = vsel %vm461, %v886, %v888
        %v892 = vsel %vm461, %v888, %v890
        %895 = vst [vmem:[#allocation2 + $0x20] sm:$0xff] %v891
        %896 = vst [vmem:[#allocation2 + $0x28] sm:$0xff] %v892
        %v897 = vld [vmem:[#allocation3 + $0x8] sm:$0xff]
        %v898 = vld [vmem:[#allocation3 + $0x10] sm:$0xff]
        %v899 = vld [vmem:[#allocation3 + $0x18] sm:$0xff]
        %v900 = vld [vmem:[%s471] ss:$8 sm:$0x3]
        %v902 = vlaneseq
        %v903 = vshrl.u32 %v902, 7
        %v904 = vsub.s32 0, %v903
        %v905 = vrot.slane %v900, %v904
        %v906 = vlaneseq
        %v907 = vshrl.u32 %v906, 7
        %v908 = vsub.s32 1, %v907
        %v909 = vrot.slane %v900, %v908
        %910 = vrot.lane.b32.xlu0 %v905, 127
        %v911 = vpop.permute.xlu0 %910
        %912 = vrot.lane.b32.xlu0 %v909, 127
        %v913 = vpop.permute.xlu0 %912
        %v914 = vsel %vm486, %v911, %v913
        %v918 = vmul.f32 %v897, %v911
        %v919 = vmul.f32 %v898, %v914
        %v920 = vmul.f32 %v899, %v913
        %924 = vrot.lane.b32.xlu0 %v918, 1
        %v925 = vpop.permute.xlu0 %924
        %926 = vrot.lane.b32.xlu0 %v919, 1
        %v927 = vpop.permute.xlu0 %926
        %928 = vrot.lane.b32.xlu0 %v920, 1
        %v929 = vpop.permute.xlu0 %928
        %v930 = vsel %vm503, %v925, %v927
        %v931 = vsel %vm503, %v927, %v929
        %934 = vst [vmem:[#allocation2 + $0x30] sm:$0xff] %v930
        %935 = vst [vmem:[#allocation2 + $0x38] sm:$0xff] %v931
        %v936 = vld [vmem:[#allocation3] sm:$0xff]
        %v937 = vld [vmem:[#allocation3 + $0x8] sm:$0xff]
        %938 = vst [vmem:[#allocation2 + $0x40] sm:$0xff] %v936
        %939 = vst [vmem:[#allocation2 + $0x48] sm:$0xff] %v937
        %v940 = vld [vmem:[#allocation3] sm:$0xff]
        %v941 = vld [vmem:[#allocation3 + $0x8] sm:$0xff]
        %v942 = vld [vmem:[#allocation3 + $0x10] sm:$0xff]
        %v943 = vld [vmem:[%s517] ss:$8 sm:$0x3]
        %v945 = vlaneseq
        %v946 = vshrl.u32 %v945, 7
        %v947 = vsub.s32 0, %v946
        %v948 = vrot.slane %v943, %v947
        %v949 = vlaneseq
        %v950 = vshrl.u32 %v949, 7
        %v951 = vsub.s32 1, %v950
        %v952 = vrot.slane %v943, %v951
        %953 = vrot.lane.b32.xlu0 %v948, 1
        %v954 = vpop.permute.xlu0 %953
        %955 = vrot.lane.b32.xlu0 %v952, 1
        %v956 = vpop.permute.xlu0 %955
        %v957 = vsel %vm503, %v954, %v956
        %v961 = vmul.f32 %v940, %v954
        %v962 = vmul.f32 %v941, %v957
        %v963 = vmul.f32 %v942, %v956
        %967 = vrot.lane.b32.xlu0 %v961, 127
        %v968 = vpop.permute.xlu0 %967
        %969 = vrot.lane.b32.xlu0 %v962, 127
        %v970 = vpop.permute.xlu0 %969
        %971 = vrot.lane.b32.xlu0 %v963, 127
        %v972 = vpop.permute.xlu0 %971
        %v973 = vsel %vm486, %v968, %v970
        %v974 = vsel %vm486, %v970, %v972
        %977 = vst [vmem:[#allocation2 + $0x50] sm:$0xff] %v973
        %978 = vst [vmem:[#allocation2 + $0x58] sm:$0xff] %v974
        %v979 = vld [vmem:[#allocation3] sm:$0xff]
        %v980 = vld [vmem:[#allocation3 + $0x8] sm:$0xff]
        %v981 = vld [vmem:[#allocation3 + $0x10] sm:$0xff]
        %v982 = vld [vmem:[%s557] ss:$8 sm:$0x3]
        %v984 = vlaneseq
        %v985 = vshrl.u32 %v984, 7
        %v986 = vsub.s32 0, %v985
        %v987 = vrot.slane %v982, %v986
        %v988 = vlaneseq
        %v989 = vshrl.u32 %v988, 7
        %v990 = vsub.s32 1, %v989
        %v991 = vrot.slane %v982, %v990
        %992 = vrot.lane.b32.xlu0 %v987, 15
        %v993 = vpop.permute.xlu0 %992
        %994 = vrot.lane.b32.xlu0 %v991, 15
        %v995 = vpop.permute.xlu0 %994
        %v996 = vsel %vm461, %v993, %v995
        %v1000 = vmul.f32 %v979, %v993
        %v1001 = vmul.f32 %v980, %v996
        %v1002 = vmul.f32 %v981, %v995
        %1006 = vrot.lane.b32.xlu0 %v1000, 113
        %v1007 = vpop.permute.xlu0 %1006
        %1008 = vrot.lane.b32.xlu0 %v1001, 113
        %v1009 = vpop.permute.xlu0 %1008
        %1010 = vrot.lane.b32.xlu0 %v1002, 113
        %v1011 = vpop.permute.xlu0 %1010
        %v1012 = vsel %vm444, %v1007, %v1009
        %v1013 = vsel %vm444, %v1009, %v1011
        %1016 = vst [vmem:[#allocation2 + $0x60] sm:$0xff] %v1012
        %1017 = vst [vmem:[#allocation2 + $0x68] sm:$0xff] %v1013
        %v1018 = vld [vmem:[#allocation3] sm:$0xff]
        %v1019 = vld [vmem:[#allocation3 + $0x8] sm:$0xff]
        %v1020 = vld [vmem:[#allocation3 + $0x10] sm:$0xff]
        %v1021 = vld [vmem:[%s597] ss:$8 sm:$0x3]
        %v1023 = vlaneseq
        %v1024 = vshrl.u32 %v1023, 7
        %v1025 = vsub.s32 0, %v1024
        %v1026 = vrot.slane %v1021, %v1025
        %v1027 = vlaneseq
        %v1028 = vshrl.u32 %v1027, 7
        %v1029 = vsub.s32 1, %v1028
        %v1030 = vrot.slane %v1021, %v1029
        %1031 = vrot.lane.b32.xlu0 %v1026, 16
        %v1032 = vpop.permute.xlu0 %1031
        %1033 = vrot.lane.b32.xlu0 %v1030, 16
        %v1034 = vpop.permute.xlu0 %1033
        %v1035 = vsel %vm419, %v1032, %v1034
        %v1039 = vmul.f32 %v1018, %v1032
        %v1040 = vmul.f32 %v1019, %v1035
        %v1041 = vmul.f32 %v1020, %v1034
        %1045 = vrot.lane.b32.xlu0 %v1039, 112
        %v1046 = vpop.permute.xlu0 %1045
        %1047 = vrot.lane.b32.xlu0 %v1040, 112
        %v1048 = vpop.permute.xlu0 %1047
        %1049 = vrot.lane.b32.xlu0 %v1041, 112
        %v1050 = vpop.permute.xlu0 %1049
        %v1051 = vsel %vm402, %v1046, %v1048
        %v1052 = vsel %vm402, %v1048, %v1050
        %1055 = vst [vmem:[#allocation2 + $0x70] sm:$0xff] %v1051
        %1056 = vst [vmem:[#allocation2 + $0x78] sm:$0xff] %v1052
        %v1057 = vld [vmem:[#allocation3] sm:$0xff]
        %v1058 = vld [vmem:[#allocation3 + $0x8] sm:$0xff]
        %v1059 = vld [vmem:[#allocation3 + $0x10] sm:$0xff]
        %v1060 = vld [vmem:[%s637] ss:$8 sm:$0x3]
        %v1062 = vlaneseq
        %v1063 = vshrl.u32 %v1062, 7
        %v1064 = vsub.s32 0, %v1063
        %v1065 = vrot.slane %v1060, %v1064
        %v1066 = vlaneseq
        %v1067 = vshrl.u32 %v1066, 7
        %v1068 = vsub.s32 1, %v1067
        %v1069 = vrot.slane %v1060, %v1068
        %1070 = vrot.lane.b32.xlu0 %v1065, 17
        %v1071 = vpop.permute.xlu0 %1070
        %1072 = vrot.lane.b32.xlu0 %v1069, 17
        %v1073 = vpop.permute.xlu0 %1072
        %v1074 = vsel %vm377, %v1071, %v1073
        %v1078 = vmul.f32 %v1057, %v1071
        %v1079 = vmul.f32 %v1058, %v1074
        %v1080 = vmul.f32 %v1059, %v1073
        %1084 = vrot.lane.b32.xlu0 %v1078, 111
        %v1085 = vpop.permute.xlu0 %1084
        %1086 = vrot.lane.b32.xlu0 %v1079, 111
        %v1087 = vpop.permute.xlu0 %1086
        %1088 = vrot.lane.b32.xlu0 %v1080, 111
        %v1089 = vpop.permute.xlu0 %1088
        %v1090 = vsel %vm360, %v1085, %v1087
        %v1091 = vsel %vm360, %v1087, %v1089
        %1094 = vst [vmem:[#allocation2 + $0x80] sm:$0xff] %v1090
        %1095 = vst [vmem:[#allocation2 + $0x88] sm:$0xff] %v1091
        %v1096 = vld [vmem:[#allocation2] sm:$0xff]
        %v1097 = vld [vmem:[#allocation2 + $0x8] sm:$0xff]
        %v1098 = vld [vmem:[#allocation2 + $0x10] sm:$0xff]
        %v1099 = vld [vmem:[#allocation2 + $0x18] sm:$0xff]
        %v1100 = vld [vmem:[#allocation2 + $0x20] sm:$0xff]
        %v1101 = vld [vmem:[#allocation2 + $0x28] sm:$0xff]
        %v1102 = vld [vmem:[#allocation2 + $0x30] sm:$0xff]
        %v1103 = vld [vmem:[#allocation2 + $0x38] sm:$0xff]
        %v1104 = vld [vmem:[#allocation2 + $0x40] sm:$0xff]
        %v1105 = vld [vmem:[#allocation2 + $0x48] sm:$0xff]
        %v1106 = vld [vmem:[#allocation2 + $0x50] sm:$0xff]
        %v1107 = vld [vmem:[#allocation2 + $0x58] sm:$0xff]
        %v1108 = vld [vmem:[#allocation2 + $0x60] sm:$0xff]
        %v1109 = vld [vmem:[#allocation2 + $0x68] sm:$0xff]
        %v1110 = vld [vmem:[#allocation2 + $0x70] sm:$0xff]
        %v1111 = vld [vmem:[#allocation2 + $0x78] sm:$0xff]
        %v1112 = vld [vmem:[#allocation2 + $0x80] sm:$0xff]
        %v1113 = vld [vmem:[#allocation2 + $0x88] sm:$0xff]
        %v1114 = vld [vmem:[%s4] sm:$0xff]
        %v1115 = vld [vmem:[%s5] sm:$0xff]
        %1117 = vset.pattern.permute.xlu0 0
        %1118 = vperm.xlu0 %1117, %v1115
        %v1119 = vpop.permute.xlu0 %1118
        %v1122 = vsel %vm699, %v1114, 0
        %1124 = vmatprep.subr.mxu0 0.0
        %1125 = vmatpush1.msra.mxu0 0.0
        %1126 = vmatprep.subr.mxu0 0.0
        %1127 = vmatpush1.msra.mxu0 0.0
        %1128 = vmatprep.subr.mxu0 0.0
        %1129 = vmatpush1.msra.mxu0 0.0
        %1130 = vmatprep.subr.mxu0 0.0
        %1131 = vmatpush1.msra.mxu0 0.0
        %1132 = vmatprep.subr.mxu0 0.0
        %1133 = vmatpush1.msra.mxu0 0.0
        %1134 = vmatprep.subr.mxu0 0.0
        %1135 = vmatpush1.msra.mxu0 0.0
        %1136 = vmatprep.subr.mxu0 0.0
        %1137 = vmatpush1.msra.mxu0 0.0
        %1138 = vmatprep.subr.mxu0 %v1113
        %1139 = vmatpush1.msra.mxu0 %v1112
        %1140 = vmatprep.subr.mxu0 %v1111
        %1141 = vmatpush1.msra.mxu0 %v1110
        %1142 = vmatprep.subr.mxu0 %v1109
        %1143 = vmatpush1.msra.mxu0 %v1108
        %1144 = vmatprep.subr.mxu0 %v1107
        %1145 = vmatpush1.msra.mxu0 %v1106
        %1146 = vmatprep.subr.mxu0 %v1105
        %1147 = vmatpush1.msra.mxu0 %v1104
        %1148 = vmatprep.subr.mxu0 %v1103
        %1149 = vmatpush1.msra.mxu0 %v1102
        %1150 = vmatprep.subr.mxu0 %v1101
        %1151 = vmatpush1.msra.mxu0 %v1100
        %1152 = vmatprep.subr.mxu0 %v1099
        %1153 = vmatpush1.msra.mxu0 %v1098
        %1154 = vmatprep.subr.mxu0 %v1097
        %1155 = vmatpush1.msra.mxu0 %v1096
        %1156 = vmatprep.subr.mxu0 0.0
        %1157 = vmatpush2.msra.mxu0 0.0
        %1158 = vmatprep.subr.mxu0 0.0
        %1159 = vmatpush2.msra.mxu0 0.0
        %1160 = vmatprep.subr.mxu0 0.0
        %1161 = vmatpush2.msra.mxu0 0.0
        %1162 = vmatprep.subr.mxu0 0.0
        %1163 = vmatpush2.msra.mxu0 0.0
        %1164 = vmatprep.subr.mxu0 0.0
        %1165 = vmatpush2.msra.mxu0 0.0
        %1166 = vmatprep.subr.mxu0 0.0
        %1167 = vmatpush2.msra.mxu0 0.0
        %1168 = vmatprep.subr.mxu0 0.0
        %1169 = vmatpush2.msra.mxu0 0.0
        %1170 = vmatprep.subr.mxu0 0.0
        %1171 = vmatpush2.msra.mxu0 0.0
        %1172 = vmatprep.subr.mxu0 0.0
        %1173 = vmatpush2.msra.mxu0 0.0
        %1174 = vmatprep.subr.mxu0 0.0
        %1175 = vmatpush2.msra.mxu0 0.0
        %1176 = vmatprep.subr.mxu0 0.0
        %1177 = vmatpush2.msra.mxu0 0.0
        %1178 = vmatprep.subr.mxu0 0.0
        %1179 = vmatpush2.msra.mxu0 0.0
        %1180 = vmatprep.subr.mxu0 0.0
        %1181 = vmatpush2.msra.mxu0 0.0
        %1182 = vmatprep.subr.mxu0 0.0
        %1183 = vmatpush2.msra.mxu0 0.0
        %1184 = vmatprep.subr.mxu0 0.0
        %1185 = vmatpush2.msra.mxu0 0.0
        %1186 = vmatprep.subr.mxu0 0.0
        %1187 = vmatpush2.msra.mxu0 0.0
        %1188 = vmatprep.mubr.f32.mxu0 0.0
        %1189 = vmatmul.mubr.f32.gmra.mxu0 %v1122
        %v1190 = vpop.f32.mrf.mxu0
        %v1191 = vadd.f32 %v1119, %v1190
        %v1192 = vpop.f32.mrf.mxu0
        %v1193 = vadd.f32 %v1119, %v1192
        %1194 = vdwg.mxu0
        %v1195 = vmax.f32 %v1191, 0.0
        %v1196 = vmax.f32 %v1193, 0.0
        %v1197 = vld [vmem:[%s6] sm:$0xff]
        %v1198 = vld [vmem:[%s7] sm:$0xff]
        %1200 = vset.pattern.permute.xlu0 0
        %1201 = vperm.xlu0 %1200, %v1198
        %v1202 = vpop.permute.xlu0 %1201
        %vm1204 = vcmask 64512
        %v1206 = vsel %vm1204, %v1197, 0
        %1208 = vmatprep.subr.mxu0 0.0
        %1209 = vmatpush1.msra.mxu0 0.0
        %1210 = vmatprep.subr.mxu0 0.0
        %1211 = vmatpush1.msra.mxu0 0.0
        %1212 = vmatprep.subr.mxu0 0.0
        %1213 = vmatpush1.msra.mxu0 0.0
        %1214 = vmatprep.subr.mxu0 0.0
        %1215 = vmatpush1.msra.mxu0 0.0
        %1216 = vmatprep.subr.mxu0 0.0
        %1217 = vmatpush1.msra.mxu0 0.0
        %1218 = vmatprep.subr.mxu0 0.0
        %1219 = vmatpush1.msra.mxu0 0.0
        %1220 = vmatprep.subr.mxu0 0.0
        %1221 = vmatpush1.msra.mxu0 0.0
        %1222 = vmatprep.subr.mxu0 0.0
        %1223 = vmatpush1.msra.mxu0 0.0
        %1224 = vmatprep.subr.mxu0 0.0
        %1225 = vmatpush1.msra.mxu0 0.0
        %1226 = vmatprep.subr.mxu0 0.0
        %1227 = vmatpush1.msra.mxu0 0.0
        %1228 = vmatprep.subr.mxu0 0.0
        %1229 = vmatpush1.msra.mxu0 0.0
        %1230 = vmatprep.subr.mxu0 0.0
        %1231 = vmatpush1.msra.mxu0 0.0
        %1232 = vmatprep.subr.mxu0 0.0
        %1233 = vmatpush1.msra.mxu0 0.0
        %1234 = vmatprep.subr.mxu0 0.0
        %1235 = vmatpush1.msra.mxu0 0.0
        %1236 = vmatprep.subr.mxu0 0.0
        %1237 = vmatpush1.msra.mxu0 0.0
        %1238 = vmatprep.subr.mxu0 %v1196
        %1239 = vmatpush1.msra.mxu0 %v1195
        %1240 = vmatprep.subr.mxu0 0.0
        %1241 = vmatpush2.msra.mxu0 0.0
        %1242 = vmatprep.subr.mxu0 0.0
        %1243 = vmatpush2.msra.mxu0 0.0
        %1244 = vmatprep.subr.mxu0 0.0
        %1245 = vmatpush2.msra.mxu0 0.0
        %1246 = vmatprep.subr.mxu0 0.0
        %1247 = vmatpush2.msra.mxu0 0.0
        %1248 = vmatprep.subr.mxu0 0.0
        %1249 = vmatpush2.msra.mxu0 0.0
        %1250 = vmatprep.subr.mxu0 0.0
        %1251 = vmatpush2.msra.mxu0 0.0
        %1252 = vmatprep.subr.mxu0 0.0
        %1253 = vmatpush2.msra.mxu0 0.0
        %1254 = vmatprep.subr.mxu0 0.0
        %1255 = vmatpush2.msra.mxu0 0.0
        %1256 = vmatprep.subr.mxu0 0.0
        %1257 = vmatpush2.msra.mxu0 0.0
        %1258 = vmatprep.subr.mxu0 0.0
        %1259 = vmatpush2.msra.mxu0 0.0
        %1260 = vmatprep.subr.mxu0 0.0
        %1261 = vmatpush2.msra.mxu0 0.0
        %1262 = vmatprep.subr.mxu0 0.0
        %1263 = vmatpush2.msra.mxu0 0.0
        %1264 = vmatprep.subr.mxu0 0.0
        %1265 = vmatpush2.msra.mxu0 0.0
        %1266 = vmatprep.subr.mxu0 0.0
        %1267 = vmatpush2.msra.mxu0 0.0
        %1268 = vmatprep.subr.mxu0 0.0
        %1269 = vmatpush2.msra.mxu0 0.0
        %1270 = vmatprep.subr.mxu0 0.0
        %1271 = vmatpush2.msra.mxu0 0.0
        %1272 = vmatprep.mubr.f32.mxu0 0.0
        %1273 = vmatmul.mubr.f32.gmra.mxu0 %v1206
        %v1274 = vpop.f32.mrf.mxu0
        %v1275 = vadd.f32 %v1202, %v1274
        %v1276 = vpop.f32.mrf.mxu0
        %v1277 = vadd.f32 %v1202, %v1276
        %1278 = vdwg.mxu0
        %1279 = vst [vmem:[%s336] sm:$0xff] %v1275
        %1280 = vst [vmem:[%s336 + $0x8] sm:$0xff] %v1277
        %s1281 = sand.u32 %s207, 1
        %s1282 = scalar_lea.sflag [#allocation6], %s1281
        %s1283 = sand.u32 %s207, 1
        %s1284 = smul.addr %s1283, 16
        %s1285 = scalar_lea.vmem [#allocation9], %s1284
        // Predicated region
        $region61: #{tpu_custom_call.1} parent=51 // pred_check
          %p1286 = pneg %p217
        $region62: #{tpu_custom_call.1} parent=51 // pred_check_branch
          %1288 = sbr.rel (%p1286) target = $region64
        $region63: #{tpu_custom_call.1} parent=51 // pred_region
          %s1290 = ssub.s32 256, 256
          %1291 = vsyncadd %s1282, %s1290
          %s1292 = smul.addr %s26, 2
          %s1293 = smul.addr %s1292, 128
          %s1294 = scalar_lea.hbm %s8, %s1293
          %s1296 = sshll.u32 %s1285, 4
          %s1297 = int_to_ptr.vmem [resolvable:$true] %s1296
          %1299 = dma.vmem_to_hbm [thread:$0]  %s1297, 256, %s1294, %s1282
        $region64: #{tpu_custom_call.1} parent=51 // pred_fallthru
          _
      $region52: #{tpu_custom_call.1} parent=5 // pred_fallthru
        _
      %p1300 = scmp.le.s32.totalorder 2, %s21
      // Predicated region
      $region65: #{tpu_custom_call.1} parent=5 // pred_check
        %p1301 = pneg %p1300
      $region66: #{tpu_custom_call.1} parent=5 // pred_check_branch
        %1303 = sbr.rel (%p1301) target = $region68
      $region67: #{tpu_custom_call.1} parent=5 // pred_region
        %s1304 = ssub.s32 %s21, 2
        // Predicated region
        $region69: #{tpu_custom_call.1} parent=67 // pred_check
          %p1305 = pneg %p223
        $region70: #{tpu_custom_call.1} parent=67 // pred_check_branch
          %1307 = sbr.rel (%p1305) target = $region72
        $region71: #{tpu_custom_call.1} parent=67 // pred_region
          %s1308 = sand.u32 %s208, 1
          %s1309 = scalar_lea.sflag [#allocation6], %s1308
          %s1310 = sand.u32 %s208, 1
          %s1311 = smul.addr %s1310, 16
          %s1312 = scalar_lea.vmem [#allocation9], %s1311
          %1313 = dma.done %s1309, 256
        $region72: #{tpu_custom_call.1} parent=67 // pred_fallthru
          _
      $region68: #{tpu_custom_call.1} parent=5 // pred_fallthru
        _
    $region6: #{tpu_custom_call.1} parent=1 // loop_footer
      %s25 = sadd.s32 1, %s21
    $region7: #{tpu_custom_call.1} parent=1 // loop_footer_branch
      %20 = sbr.rel target = $region3
    $region8: #{tpu_custom_call.1} parent=1 // loop_exit
      _
    %1314 = vsyncpa [#allocation5], 1
    %s1315 = scalar_lea.sflag [#allocation5], 1
    %1316 = vsyncpa %s1315, 1
    %1317 = vsyncpa [#allocation8], 1
    %1318 = vsyncpa [#allocation6], 1
    %s1319 = scalar_lea.sflag [#allocation6], 1
    %1320 = vsyncpa %s1319, 1

</llo_original>
